<compile_context>
chip_gen: v6e
topology: v6e:2x2x1
jax: 0.10.0
libtpu: 0.0.40
codegen_flags: <defaults>
</compile_context>

<pallas_src>
import functools

import jax
import jax.numpy as jnp
from jax.experimental import pallas as pl
from jax.experimental.pallas import tpu as pltpu

_BN_EPS = 1e-5


def _uniform_bits(shape, mixed_seed):
    """Stateless per-element random bits (murmur3-finalizer style hash of the
    element index), using only jnp integer ops so it lowers on Mosaic and in
    interpret mode alike."""
    n, d = shape
    row = jax.lax.broadcasted_iota(jnp.int32, shape, 0).astype(jnp.uint32)
    col = jax.lax.broadcasted_iota(jnp.int32, shape, 1).astype(jnp.uint32)
    x = row * jnp.uint32(d) + col
    x = x ^ jnp.uint32(mixed_seed)
    x = (x ^ (x >> 16)) * jnp.uint32(0x7FEB352D)
    x = (x ^ (x >> 15)) * jnp.uint32(0x846CA68B)
    x = x ^ (x >> 16)
    return x


def _dropout_mask(h, mixed_seed, p):
    """Inverted dropout WITHOUT the 1/(1-p) rescale (folded into next layer's W).
    Keep decision is an integer compare on 24 random bits: no cast, no fmul."""
    bits = _uniform_bits(h.shape, mixed_seed)
    r = (bits >> 8).astype(jnp.int32)             # 24 bits -> non-negative int32
    thresh = int(p * float(1 << 24))              # keep iff r >= p * 2^24
    return jnp.where(r >= thresh, h, jnp.zeros_like(h))


def _bn_relu(h, g, beta):
    """Training-mode BatchNorm1d (biased batch variance, eps=1e-5, affine) + ReLU,
    as a fused per-feature scale/shift."""
    mean = jnp.mean(h, axis=0, keepdims=True)
    var = jnp.mean(h * h, axis=0, keepdims=True) - mean * mean
    scale = g * jax.lax.rsqrt(var + _BN_EPS)
    shift = beta - mean * scale
    return jnp.maximum(h * scale + shift, 0.0)


def projection_mlp_kernel(
    x_ref,
    w1_ref, g1_ref, be1_ref,
    w2_ref, g2_ref, be2_ref,
    w3_ref, b3_ref,
    o_ref,
    *,
    seed,
):
    # MXU matmuls take bf16 inputs; accumulation and all BN/dropout math in f32.
    x = x_ref[...].astype(jnp.bfloat16)

    # layer1: Linear (bias omitted: cancelled by train-mode BN) -> BN -> ReLU -> dropout 0.5
    h = jnp.dot(x, w1_ref[...], preferred_element_type=jnp.float32)
    h = _bn_relu(h, g1_ref[...], be1_ref[...])
    h = _dropout_mask(h, (seed * 0x9E3779B9 + 0x243F6A88) & 0xFFFFFFFF, 0.5)

    # layer2: Linear -> BN -> ReLU -> dropout 0.3
    h = jnp.dot(h.astype(jnp.bfloat16), w2_ref[...], preferred_element_type=jnp.float32)
    h = _bn_relu(h, g2_ref[...], be2_ref[...])
    h = _dropout_mask(h, (seed * 0x9E3779B9 + 0x85A308D3) & 0xFFFFFFFF, 0.3)

    # layer3: output fc (no ReLU in this forward path)
    out = jnp.dot(h.astype(jnp.bfloat16), w3_ref[...], preferred_element_type=jnp.float32)
    o_ref[...] = (out + b3_ref[...]).astype(o_ref.dtype)


def projection_mlp_forward(x, params, seed):
    """x: [N, in_dim] float32.  params: dict of weights.  seed: python int."""
    n, _ = x.shape
    out_dim = params["w3"].shape[1]

    # ---- trace-time weight prep (free, outside the kernel) -------------------
    # * b1/b2 are not passed: a per-feature bias right before train-mode BN is
    #   exactly removed by the mean subtraction.
    # * Fold the dropout 1/(1-p) rescales into the *next* layer's weights.
    # * Store matmul weights in bf16.
    w1 = params["w1"].astype(jnp.bfloat16)
    w2 = (params["w2"] * (1.0 / 0.5)).astype(jnp.bfloat16)   # dropout p=0.5 rescale
    w3 = (params["w3"] * (1.0 / 0.7)).astype(jnp.bfloat16)   # dropout p=0.3 rescale

    vmem = pl.BlockSpec(memory_space=pltpu.MemorySpace.VMEM)
    kernel = functools.partial(projection_mlp_kernel, seed=int(seed))

    return pl.pallas_call(
        kernel,
        out_shape=jax.ShapeDtypeStruct((n, out_dim), jnp.float32),
        in_specs=[vmem] * 9,
        out_specs=vmem,
        compiler_params=pltpu.CompilerParams(
            vmem_limit_bytes=32 * 1024 * 1024,   # explicit budget; valid on v5e/v6e/v7x
        ),
    )(
        x,
        w1, params["g1"], params["beta1"],
        w2, params["g2"], params["beta2"],
        w3, params["b3"],
    )


def init_params(key, in_dim, hidden_dim, out_dim):
    """Deterministic synthetic parameters (shapes mirror projection_MLP.__init__)."""
    ks = jax.random.split(key, 6)

    def linear(kw, kb, fan_in, fan_out):
        bound = 1.0 / jnp.sqrt(jnp.float32(fan_in))
        # stored pre-transposed: [in, out] so the kernel computes x @ W (+ b)
        w = jax.random.uniform(kw, (fan_in, fan_out), jnp.float32, -bound, bound)
        b = jax.random.uniform(kb, (1, fan_out), jnp.float32, -bound, bound)
        return w, b

    w1, b1 = linear(ks[0], ks[1], in_dim, hidden_dim)
    w2, b2 = linear(ks[2], ks[3], hidden_dim, hidden_dim)
    w3, b3 = linear(ks[4], ks[5], hidden_dim, out_dim)

    return {
        # b1/b2 kept for module fidelity but mathematically cancelled by BN,
        # so the kernel never sees them.
        "w1": w1, "b1": b1,
        "g1": jnp.ones((1, hidden_dim), jnp.float32),
        "beta1": jnp.zeros((1, hidden_dim), jnp.float32),
        "w2": w2, "b2": b2,
        "g2": jnp.ones((1, hidden_dim), jnp.float32),
        "beta2": jnp.zeros((1, hidden_dim), jnp.float32),
        "w3": w3, "b3": b3,
    }


if __name__ == "__main__":
    # Small but lane/sublane-aligned shapes: batch a multiple of 8 sublanes,
    # feature dims multiples of 128 lanes -> dense vregs, unmasked output stores.
    batch, in_dim, hidden_dim, out_dim = 128, 128, 256, 128

    key = jax.random.PRNGKey(0)
    kx, kp = jax.random.split(key)
    x = jax.random.normal(kx, (batch, in_dim), dtype=jnp.float32)
    params = init_params(kp, in_dim, hidden_dim, out_dim)

    out = projection_mlp_forward(x, params, seed=0)
    out = jax.block_until_ready(out)

    assert out.shape == (batch, out_dim) and out.dtype == jnp.float32
    assert bool(jnp.all(jnp.isfinite(out)))
    print("KERNEL_OK")
</pallas_src>

<mosaic_0001>
module attributes {stable_mosaic.version = 11 : i64} {
  func.func @projection_mlp_kernel(%arg0: memref<128x128xf32, #tpu.memory_space<vmem>>, %arg1: memref<128x256xbf16, #tpu.memory_space<vmem>>, %arg2: memref<1x256xf32, #tpu.memory_space<vmem>>, %arg3: memref<1x256xf32, #tpu.memory_space<vmem>>, %arg4: memref<256x256xbf16, #tpu.memory_space<vmem>>, %arg5: memref<1x256xf32, #tpu.memory_space<vmem>>, %arg6: memref<1x256xf32, #tpu.memory_space<vmem>>, %arg7: memref<256x128xbf16, #tpu.memory_space<vmem>>, %arg8: memref<1x128xf32, #tpu.memory_space<vmem>>, %arg9: memref<128x128xf32, #tpu.memory_space<vmem>>) attributes {dimension_semantics = [], scalar_prefetch = 0 : i64, scratch_operands = 0 : i64, tpu.core_type = #tpu.core_type<tc>} {
    %c0 = arith.constant 0 : index
    %c0_0 = arith.constant 0 : index
    %0 = vector.load %arg0[%c0, %c0_0] : memref<128x128xf32, #tpu.memory_space<vmem>>, vector<128x128xf32>
    %1 = arith.truncf %0 : vector<128x128xf32> to vector<128x128xbf16>
    %c0_1 = arith.constant 0 : index
    %c0_2 = arith.constant 0 : index
    %2 = vector.load %arg1[%c0_1, %c0_2] : memref<128x256xbf16, #tpu.memory_space<vmem>>, vector<128x256xbf16>
    %cst = arith.constant dense<0.000000e+00> : vector<128x256xf32>
    %3 = tpu.matmul %1, %2, %cst {dimension_numbers = #tpu.dot_dimension_numbers<[1], [0], [0], [1], [0, 0, 1, 1], [], []>} : vector<128x128xbf16>, vector<128x256xbf16>, vector<128x256xf32> -> vector<128x256xf32>
    %c0_3 = arith.constant 0 : index
    %c0_4 = arith.constant 0 : index
    %4 = vector.load %arg2[%c0_3, %c0_4] : memref<1x256xf32, #tpu.memory_space<vmem>>, vector<1x256xf32>
    %c0_5 = arith.constant 0 : index
    %c0_6 = arith.constant 0 : index
    %5 = vector.load %arg3[%c0_5, %c0_6] : memref<1x256xf32, #tpu.memory_space<vmem>>, vector<1x256xf32>
    %cst_7 = arith.constant dense<0.000000e+00> : vector<256xf32>
    %6 = vector.multi_reduction <add>, %3, %cst_7 [0] : vector<128x256xf32> to vector<256xf32>
    %7 = vector.shape_cast %6 : vector<256xf32> to vector<1x256xf32>
    %cst_8 = arith.constant 1.280000e+02 : f32
    %8 = vector.broadcast %cst_8 : f32 to vector<1x256xf32>
    %9 = arith.divf %7, %8 : vector<1x256xf32>
    %10 = arith.mulf %3, %3 : vector<128x256xf32>
    %cst_9 = arith.constant dense<0.000000e+00> : vector<256xf32>
    %11 = vector.multi_reduction <add>, %10, %cst_9 [0] : vector<128x256xf32> to vector<256xf32>
    %12 = vector.shape_cast %11 : vector<256xf32> to vector<1x256xf32>
    %cst_10 = arith.constant 1.280000e+02 : f32
    %13 = vector.broadcast %cst_10 : f32 to vector<1x256xf32>
    %14 = arith.divf %12, %13 : vector<1x256xf32>
    %15 = arith.mulf %9, %9 : vector<1x256xf32>
    %16 = arith.subf %14, %15 : vector<1x256xf32>
    %cst_11 = arith.constant 9.99999974E-6 : f32
    %17 = vector.broadcast %cst_11 : f32 to vector<1x256xf32>
    %18 = arith.addf %16, %17 : vector<1x256xf32>
    %19 = math.rsqrt %18 : vector<1x256xf32>
    %20 = arith.mulf %4, %19 : vector<1x256xf32>
    %21 = arith.mulf %9, %20 : vector<1x256xf32>
    %22 = arith.subf %5, %21 : vector<1x256xf32>
    %23 = vector.broadcast %20 : vector<1x256xf32> to vector<128x256xf32>
    %24 = arith.mulf %3, %23 : vector<128x256xf32>
    %25 = vector.broadcast %22 : vector<1x256xf32> to vector<128x256xf32>
    %26 = arith.addf %24, %25 : vector<128x256xf32>
    %cst_12 = arith.constant 0.000000e+00 : f32
    %27 = vector.broadcast %cst_12 : f32 to vector<128x256xf32>
    %28 = arith.maximumf %26, %27 : vector<128x256xf32>
    %29 = tpu.iota {dimensions = array<i32: 0>} : vector<128x256xi32>
    %30 = tpu.iota {dimensions = array<i32: 1>} : vector<128x256xi32>
    %c256_i32 = arith.constant 256 : i32
    %31 = vector.broadcast %c256_i32 : i32 to vector<128x256xi32>
    %32 = arith.muli %29, %31 : vector<128x256xi32>
    %33 = arith.addi %32, %30 : vector<128x256xi32>
    %c608135816_i32 = arith.constant 608135816 : i32
    %34 = vector.broadcast %c608135816_i32 : i32 to vector<128x256xi32>
    %35 = arith.xori %33, %34 : vector<128x256xi32>
    %c16_i32 = arith.constant 16 : i32
    %36 = vector.broadcast %c16_i32 : i32 to vector<128x256xi32>
    %37 = arith.shrui %35, %36 : vector<128x256xi32>
    %38 = arith.xori %35, %37 : vector<128x256xi32>
    %c2146121005_i32 = arith.constant 2146121005 : i32
    %39 = vector.broadcast %c2146121005_i32 : i32 to vector<128x256xi32>
    %40 = arith.muli %38, %39 : vector<128x256xi32>
    %c15_i32 = arith.constant 15 : i32
    %41 = vector.broadcast %c15_i32 : i32 to vector<128x256xi32>
    %42 = arith.shrui %40, %41 : vector<128x256xi32>
    %43 = arith.xori %40, %42 : vector<128x256xi32>
    %c-2073254261_i32 = arith.constant -2073254261 : i32
    %44 = vector.broadcast %c-2073254261_i32 : i32 to vector<128x256xi32>
    %45 = arith.muli %43, %44 : vector<128x256xi32>
    %c16_i32_13 = arith.constant 16 : i32
    %46 = vector.broadcast %c16_i32_13 : i32 to vector<128x256xi32>
    %47 = arith.shrui %45, %46 : vector<128x256xi32>
    %48 = arith.xori %45, %47 : vector<128x256xi32>
    %c8_i32 = arith.constant 8 : i32
    %49 = vector.broadcast %c8_i32 : i32 to vector<128x256xi32>
    %50 = arith.shrui %48, %49 : vector<128x256xi32>
    %c8388608_i32 = arith.constant 8388608 : i32
    %51 = vector.broadcast %c8388608_i32 : i32 to vector<128x256xi32>
    %52 = arith.cmpi sge, %50, %51 : vector<128x256xi32>
    %cst_14 = arith.constant 0.000000e+00 : f32
    %53 = vector.broadcast %cst_14 : f32 to vector<128x256xf32>
    %54 = arith.select %52, %28, %53 : vector<128x256xi1>, vector<128x256xf32>
    %55 = arith.truncf %54 : vector<128x256xf32> to vector<128x256xbf16>
    %c0_15 = arith.constant 0 : index
    %c0_16 = arith.constant 0 : index
    %56 = vector.load %arg4[%c0_15, %c0_16] : memref<256x256xbf16, #tpu.memory_space<vmem>>, vector<256x256xbf16>
    %cst_17 = arith.constant dense<0.000000e+00> : vector<128x256xf32>
    %57 = tpu.matmul %55, %56, %cst_17 {dimension_numbers = #tpu.dot_dimension_numbers<[1], [0], [0], [1], [0, 0, 1, 1], [], []>} : vector<128x256xbf16>, vector<256x256xbf16>, vector<128x256xf32> -> vector<128x256xf32>
    %c0_18 = arith.constant 0 : index
    %c0_19 = arith.constant 0 : index
    %58 = vector.load %arg5[%c0_18, %c0_19] : memref<1x256xf32, #tpu.memory_space<vmem>>, vector<1x256xf32>
    %c0_20 = arith.constant 0 : index
    %c0_21 = arith.constant 0 : index
    %59 = vector.load %arg6[%c0_20, %c0_21] : memref<1x256xf32, #tpu.memory_space<vmem>>, vector<1x256xf32>
    %cst_22 = arith.constant dense<0.000000e+00> : vector<256xf32>
    %60 = vector.multi_reduction <add>, %57, %cst_22 [0] : vector<128x256xf32> to vector<256xf32>
    %61 = vector.shape_cast %60 : vector<256xf32> to vector<1x256xf32>
    %cst_23 = arith.constant 1.280000e+02 : f32
    %62 = vector.broadcast %cst_23 : f32 to vector<1x256xf32>
    %63 = arith.divf %61, %62 : vector<1x256xf32>
    %64 = arith.mulf %57, %57 : vector<128x256xf32>
    %cst_24 = arith.constant dense<0.000000e+00> : vector<256xf32>
    %65 = vector.multi_reduction <add>, %64, %cst_24 [0] : vector<128x256xf32> to vector<256xf32>
    %66 = vector.shape_cast %65 : vector<256xf32> to vector<1x256xf32>
    %cst_25 = arith.constant 1.280000e+02 : f32
    %67 = vector.broadcast %cst_25 : f32 to vector<1x256xf32>
    %68 = arith.divf %66, %67 : vector<1x256xf32>
    %69 = arith.mulf %63, %63 : vector<1x256xf32>
    %70 = arith.subf %68, %69 : vector<1x256xf32>
    %cst_26 = arith.constant 9.99999974E-6 : f32
    %71 = vector.broadcast %cst_26 : f32 to vector<1x256xf32>
    %72 = arith.addf %70, %71 : vector<1x256xf32>
    %73 = math.rsqrt %72 : vector<1x256xf32>
    %74 = arith.mulf %58, %73 : vector<1x256xf32>
    %75 = arith.mulf %63, %74 : vector<1x256xf32>
    %76 = arith.subf %59, %75 : vector<1x256xf32>
    %77 = vector.broadcast %74 : vector<1x256xf32> to vector<128x256xf32>
    %78 = arith.mulf %57, %77 : vector<128x256xf32>
    %79 = vector.broadcast %76 : vector<1x256xf32> to vector<128x256xf32>
    %80 = arith.addf %78, %79 : vector<128x256xf32>
    %cst_27 = arith.constant 0.000000e+00 : f32
    %81 = vector.broadcast %cst_27 : f32 to vector<128x256xf32>
    %82 = arith.maximumf %80, %81 : vector<128x256xf32>
    %83 = tpu.iota {dimensions = array<i32: 0>} : vector<128x256xi32>
    %84 = tpu.iota {dimensions = array<i32: 1>} : vector<128x256xi32>
    %c256_i32_28 = arith.constant 256 : i32
    %85 = vector.broadcast %c256_i32_28 : i32 to vector<128x256xi32>
    %86 = arith.muli %83, %85 : vector<128x256xi32>
    %87 = arith.addi %86, %84 : vector<128x256xi32>
    %c-2052912941_i32 = arith.constant -2052912941 : i32
    %88 = vector.broadcast %c-2052912941_i32 : i32 to vector<128x256xi32>
    %89 = arith.xori %87, %88 : vector<128x256xi32>
    %c16_i32_29 = arith.constant 16 : i32
    %90 = vector.broadcast %c16_i32_29 : i32 to vector<128x256xi32>
    %91 = arith.shrui %89, %90 : vector<128x256xi32>
    %92 = arith.xori %89, %91 : vector<128x256xi32>
    %c2146121005_i32_30 = arith.constant 2146121005 : i32
    %93 = vector.broadcast %c2146121005_i32_30 : i32 to vector<128x256xi32>
    %94 = arith.muli %92, %93 : vector<128x256xi32>
    %c15_i32_31 = arith.constant 15 : i32
    %95 = vector.broadcast %c15_i32_31 : i32 to vector<128x256xi32>
    %96 = arith.shrui %94, %95 : vector<128x256xi32>
    %97 = arith.xori %94, %96 : vector<128x256xi32>
    %c-2073254261_i32_32 = arith.constant -2073254261 : i32
    %98 = vector.broadcast %c-2073254261_i32_32 : i32 to vector<128x256xi32>
    %99 = arith.muli %97, %98 : vector<128x256xi32>
    %c16_i32_33 = arith.constant 16 : i32
    %100 = vector.broadcast %c16_i32_33 : i32 to vector<128x256xi32>
    %101 = arith.shrui %99, %100 : vector<128x256xi32>
    %102 = arith.xori %99, %101 : vector<128x256xi32>
    %c8_i32_34 = arith.constant 8 : i32
    %103 = vector.broadcast %c8_i32_34 : i32 to vector<128x256xi32>
    %104 = arith.shrui %102, %103 : vector<128x256xi32>
    %c5033164_i32 = arith.constant 5033164 : i32
    %105 = vector.broadcast %c5033164_i32 : i32 to vector<128x256xi32>
    %106 = arith.cmpi sge, %104, %105 : vector<128x256xi32>
    %cst_35 = arith.constant 0.000000e+00 : f32
    %107 = vector.broadcast %cst_35 : f32 to vector<128x256xf32>
    %108 = arith.select %106, %82, %107 : vector<128x256xi1>, vector<128x256xf32>
    %109 = arith.truncf %108 : vector<128x256xf32> to vector<128x256xbf16>
    %c0_36 = arith.constant 0 : index
    %c0_37 = arith.constant 0 : index
    %110 = vector.load %arg7[%c0_36, %c0_37] : memref<256x128xbf16, #tpu.memory_space<vmem>>, vector<256x128xbf16>
    %cst_38 = arith.constant dense<0.000000e+00> : vector<128x128xf32>
    %111 = tpu.matmul %109, %110, %cst_38 {dimension_numbers = #tpu.dot_dimension_numbers<[1], [0], [0], [1], [0, 0, 1, 1], [], []>} : vector<128x256xbf16>, vector<256x128xbf16>, vector<128x128xf32> -> vector<128x128xf32>
    %c0_39 = arith.constant 0 : index
    %c0_40 = arith.constant 0 : index
    %112 = vector.load %arg8[%c0_39, %c0_40] : memref<1x128xf32, #tpu.memory_space<vmem>>, vector<1x128xf32>
    %113 = vector.broadcast %112 : vector<1x128xf32> to vector<128x128xf32>
    %114 = arith.addf %111, %113 : vector<128x128xf32>
    %c0_41 = arith.constant 0 : index
    %c0_42 = arith.constant 0 : index
    %115 = vector.load %arg9[%c0_41, %c0_42] : memref<128x128xf32, #tpu.memory_space<vmem>>, vector<128x128xf32>
    tpu.vector_store %arg9[%c0_41, %c0_42], %114 {strides = array<i32>} : memref<128x128xf32, #tpu.memory_space<vmem>>, vector<128x128xf32>,
    return
  }
}

</mosaic_0001>

<llo_original>
// kernel: tpu_custom_call.1
$region0: #{tpu_custom_call.1}
  #allocation0 [shape = 'u32[]', space=smem, size = 0x4, offset = 0x4, fixed_abs, tag = 'smem constant byte address 0x4 - core index']
  #allocation1 [shape = 'u32[144,128]{1,0:T(1,128)}', space=vmem, size = 0x12000, scoped, tag = 'internal scratch']
  %s0 = inlined_call_operand.hbm [shape: f32[128,128], index: 0, kind: input, shape index: {}]
  %s1 = inlined_call_operand.hbm [shape: bf16[128,256], index: 1, kind: input, shape index: {}]
  %s2 = inlined_call_operand.vmem [shape: f32[1,256], index: 2, kind: input, shape index: {}]
  %s3 = inlined_call_operand.vmem [shape: f32[1,256], index: 3, kind: input, shape index: {}]
  %s4 = inlined_call_operand.hbm [shape: bf16[256,256], index: 4, kind: input, shape index: {}]
  %s5 = inlined_call_operand.vmem [shape: f32[1,256], index: 5, kind: input, shape index: {}]
  %s6 = inlined_call_operand.vmem [shape: f32[1,256], index: 6, kind: input, shape index: {}]
  %s7 = inlined_call_operand.hbm [shape: bf16[256,128], index: 7, kind: input, shape index: {}]
  %s8 = inlined_call_operand.vmem [shape: f32[1,128], index: 8, kind: input, shape index: {}]
  %s9 = inlined_call_operand.hbm [shape: f32[128,128], index: 9, kind: output, shape index: {}]
  %s10 = sld [smem:[#allocation0]]
  $region62: #{tpu_custom_call.1} parent=0
    _
  %s12 = ssub.s32 1, %s10
  %s13 = scalar_select 0, %s12, %s10
  $region1: #{tpu_custom_call.1} parent=0
    #allocation2 [shape = 'u8[65536]{0}', space=vmem, size = 0x10000, scoped, tag = 'input window, operand 0, single buffered']
    #allocation3 [shape = 's32[1]{0}', space=sflag, size = 0x4, scoped, tag = 'scoped memory for tpu_custom_call.1']
    #allocation4 [shape = 's32[1]{0}', space=sflag, size = 0x4, scoped, tag = 'scoped memory for tpu_custom_call.1']
    #allocation5 [shape = 'u8[65536]{0}', space=vmem, size = 0x10000, scoped, tag = 'input window, operand 1, single buffered']
    #allocation6 [shape = 's32[1]{0}', space=sflag, size = 0x4, scoped, tag = 'scoped memory for tpu_custom_call.1']
    #allocation7 [shape = 'u8[131072]{0}', space=vmem, size = 0x20000, scoped, tag = 'input window, operand 4, single buffered']
    #allocation8 [shape = 'u8[65536]{0}', space=vmem, size = 0x10000, scoped, tag = 'input window, operand 7, single buffered']
    #allocation9 [shape = 's32[1]{0}', space=sflag, size = 0x4, scoped, tag = 'scoped memory for tpu_custom_call.1']
    #allocation10 [shape = 'u8[65536]{0}', space=vmem, size = 0x10000, scoped, tag = 'output window, operand 0, single buffered']
    %14 = vsyncpa [#allocation3], 0
    %15 = vsyncpa [#allocation6], 0
    %16 = vsyncpa [#allocation9], 0
    %17 = vsyncpa [#allocation4], 0
    // Predicated region
    $region2: #{tpu_custom_call.1} parent=1 // pred_check
      _
    $region3: #{tpu_custom_call.1} parent=1 // pred_check_branch
      %19 = sbr.rel (0) target = $region5
    $region4: #{tpu_custom_call.1} parent=1 // pred_region
      %s21 = ssub.s32 2048, 2048
      %22 = vsyncadd [#allocation3], %s21
      %s23 = sshll.u32 [#allocation2], 4
      %s24 = int_to_ptr.vmem [resolvable:$true] %s23
      %29 = dma.hbm_to_vmem [thread:$0]  %s0, 2048, %s24, [#allocation3], 128, 128, 8
    $region5: #{tpu_custom_call.1} parent=1 // pred_fallthru
      _
    // Predicated region
    $region6: #{tpu_custom_call.1} parent=1 // pred_check
      _
    $region7: #{tpu_custom_call.1} parent=1 // pred_check_branch
      %31 = sbr.rel (0) target = $region9
    $region8: #{tpu_custom_call.1} parent=1 // pred_region
      %s33 = ssub.s32 2048, 2048
      %34 = vsyncadd [#allocation6], %s33
      %s35 = sshll.u32 [#allocation5], 4
      %s36 = int_to_ptr.vmem [resolvable:$true] %s35
      %41 = dma.hbm_to_vmem [thread:$0]  %s1, 2048, %s36, [#allocation6], 128, 128, 8
    $region9: #{tpu_custom_call.1} parent=1 // pred_fallthru
      _
    // Predicated region
    $region10: #{tpu_custom_call.1} parent=1 // pred_check
      _
    $region11: #{tpu_custom_call.1} parent=1 // pred_check_branch
      %43 = sbr.rel (0) target = $region13
    $region12: #{tpu_custom_call.1} parent=1 // pred_region
      _
    $region13: #{tpu_custom_call.1} parent=1 // pred_fallthru
      _
    // Predicated region
    $region14: #{tpu_custom_call.1} parent=1 // pred_check
      _
    $region15: #{tpu_custom_call.1} parent=1 // pred_check_branch
      %45 = sbr.rel (0) target = $region17
    $region16: #{tpu_custom_call.1} parent=1 // pred_region
      _
    $region17: #{tpu_custom_call.1} parent=1 // pred_fallthru
      _
    // Predicated region
    $region18: #{tpu_custom_call.1} parent=1 // pred_check
      _
    $region19: #{tpu_custom_call.1} parent=1 // pred_check_branch
      %47 = sbr.rel (0) target = $region21
    $region20: #{tpu_custom_call.1} parent=1 // pred_region
      %s49 = ssub.s32 4096, 4096
      %50 = vsyncadd [#allocation6], %s49
      %s51 = sshll.u32 [#allocation7], 4
      %s52 = int_to_ptr.vmem [resolvable:$true] %s51
      %57 = dma.hbm_to_vmem [thread:$0]  %s4, 4096, %s52, [#allocation6], 128, 128, 8
    $region21: #{tpu_custom_call.1} parent=1 // pred_fallthru
      _
    // Predicated region
    $region22: #{tpu_custom_call.1} parent=1 // pred_check
      _
    $region23: #{tpu_custom_call.1} parent=1 // pred_check_branch
      %59 = sbr.rel (0) target = $region25
    $region24: #{tpu_custom_call.1} parent=1 // pred_region
      _
    $region25: #{tpu_custom_call.1} parent=1 // pred_fallthru
      _
    // Predicated region
    $region26: #{tpu_custom_call.1} parent=1 // pred_check
      _
    $region27: #{tpu_custom_call.1} parent=1 // pred_check_branch
      %61 = sbr.rel (0) target = $region29
    $region28: #{tpu_custom_call.1} parent=1 // pred_region
      _
    $region29: #{tpu_custom_call.1} parent=1 // pred_fallthru
      _
    // Predicated region
    $region30: #{tpu_custom_call.1} parent=1 // pred_check
      _
    $region31: #{tpu_custom_call.1} parent=1 // pred_check_branch
      %63 = sbr.rel (0) target = $region33
    $region32: #{tpu_custom_call.1} parent=1 // pred_region
      %s65 = ssub.s32 2048, 2048
      %66 = vsyncadd [#allocation9], %s65
      %s67 = sshll.u32 [#allocation8], 4
      %s68 = int_to_ptr.vmem [resolvable:$true] %s67
      %73 = dma.hbm_to_vmem [thread:$0]  %s7, 2048, %s68, [#allocation9], 64, 64, 4
    $region33: #{tpu_custom_call.1} parent=1 // pred_fallthru
      _
    // Predicated region
    $region34: #{tpu_custom_call.1} parent=1 // pred_check
      _
    $region35: #{tpu_custom_call.1} parent=1 // pred_check_branch
      %75 = sbr.rel (0) target = $region37
    $region36: #{tpu_custom_call.1} parent=1 // pred_region
      _
    $region37: #{tpu_custom_call.1} parent=1 // pred_fallthru
      _
    // Predicated region
    $region38: #{tpu_custom_call.1} parent=1 // pred_check
      _
    $region39: #{tpu_custom_call.1} parent=1 // pred_check_branch
      %77 = sbr.rel (0) target = $region41
    $region40: #{tpu_custom_call.1} parent=1 // pred_region
      %78 = dma.done [#allocation3], 2048
    $region41: #{tpu_custom_call.1} parent=1 // pred_fallthru
      _
    // Predicated region
    $region42: #{tpu_custom_call.1} parent=1 // pred_check
      _
    $region43: #{tpu_custom_call.1} parent=1 // pred_check_branch
      %80 = sbr.rel (0) target = $region45
    $region44: #{tpu_custom_call.1} parent=1 // pred_region
      %81 = dma.done [#allocation6], 2048
    $region45: #{tpu_custom_call.1} parent=1 // pred_fallthru
      _
    // Predicated region
    $region46: #{tpu_custom_call.1} parent=1 // pred_check
      _
    $region47: #{tpu_custom_call.1} parent=1 // pred_check_branch
      %83 = sbr.rel (0) target = $region49
    $region48: #{tpu_custom_call.1} parent=1 // pred_region
      %84 = dma.done [#allocation6], 4096
    $region49: #{tpu_custom_call.1} parent=1 // pred_fallthru
      _
    // Predicated region
    $region50: #{tpu_custom_call.1} parent=1 // pred_check
      _
    $region51: #{tpu_custom_call.1} parent=1 // pred_check_branch
      %86 = sbr.rel (0) target = $region53
    $region52: #{tpu_custom_call.1} parent=1 // pred_region
      %87 = dma.done [#allocation9], 2048
    $region53: #{tpu_custom_call.1} parent=1 // pred_fallthru
      _
    %v89 = vld [vmem:[#allocation2] sm:$0xff]
    %v90 = vld [vmem:[#allocation2 + $0x8] sm:$0xff]
    %v91 = vld [vmem:[#allocation2 + $0x10] sm:$0xff]
    %v92 = vld [vmem:[#allocation2 + $0x18] sm:$0xff]
    %v93 = vld [vmem:[#allocation2 + $0x20] sm:$0xff]
    %v94 = vld [vmem:[#allocation2 + $0x28] sm:$0xff]
    %v95 = vld [vmem:[#allocation2 + $0x30] sm:$0xff]
    %v96 = vld [vmem:[#allocation2 + $0x38] sm:$0xff]
    %v97 = vld [vmem:[#allocation2 + $0x40] sm:$0xff]
    %v98 = vld [vmem:[#allocation2 + $0x48] sm:$0xff]
    %v99 = vld [vmem:[#allocation2 + $0x50] sm:$0xff]
    %v100 = vld [vmem:[#allocation2 + $0x58] sm:$0xff]
    %v101 = vld [vmem:[#allocation2 + $0x60] sm:$0xff]
    %v102 = vld [vmem:[#allocation2 + $0x68] sm:$0xff]
    %v103 = vld [vmem:[#allocation2 + $0x70] sm:$0xff]
    %v104 = vld [vmem:[#allocation2 + $0x78] sm:$0xff]
    %v105 = vpack.c.bf16 %v90, %v89
    %v106 = vpack.c.bf16 %v92, %v91
    %v107 = vpack.c.bf16 %v94, %v93
    %v108 = vpack.c.bf16 %v96, %v95
    %v109 = vpack.c.bf16 %v98, %v97
    %v110 = vpack.c.bf16 %v100, %v99
    %v111 = vpack.c.bf16 %v102, %v101
    %v112 = vpack.c.bf16 %v104, %v103
    %v113 = vld [vmem:[#allocation5] sm:$0xff]
    %v114 = vld [vmem:[#allocation5 + $0x8] sm:$0xff]
    %v115 = vld [vmem:[#allocation5 + $0x10] sm:$0xff]
    %v116 = vld [vmem:[#allocation5 + $0x18] sm:$0xff]
    %v117 = vld [vmem:[#allocation5 + $0x20] sm:$0xff]
    %v118 = vld [vmem:[#allocation5 + $0x28] sm:$0xff]
    %v119 = vld [vmem:[#allocation5 + $0x30] sm:$0xff]
    %v120 = vld [vmem:[#allocation5 + $0x38] sm:$0xff]
    %v121 = vld [vmem:[#allocation5 + $0x40] sm:$0xff]
    %v122 = vld [vmem:[#allocation5 + $0x48] sm:$0xff]
    %v123 = vld [vmem:[#allocation5 + $0x50] sm:$0xff]
    %v124 = vld [vmem:[#allocation5 + $0x58] sm:$0xff]
    %v125 = vld [vmem:[#allocation5 + $0x60] sm:$0xff]
    %v126 = vld [vmem:[#allocation5 + $0x68] sm:$0xff]
    %v127 = vld [vmem:[#allocation5 + $0x70] sm:$0xff]
    %v128 = vld [vmem:[#allocation5 + $0x78] sm:$0xff]
    %v145 = vunpack.c.l.b16 %v113
    %v146 = vunpack.c.h.b16 %v113
    %v147 = vunpack.c.l.b16 %v114
    %v148 = vunpack.c.h.b16 %v114
    %v149 = vunpack.c.l.b16 %v115
    %v150 = vunpack.c.h.b16 %v115
    %v151 = vunpack.c.l.b16 %v116
    %v152 = vunpack.c.h.b16 %v116
    %v153 = vunpack.c.l.b16 %v117
    %v154 = vunpack.c.h.b16 %v117
    %v155 = vunpack.c.l.b16 %v118
    %v156 = vunpack.c.h.b16 %v118
    %v157 = vunpack.c.l.b16 %v119
    %v158 = vunpack.c.h.b16 %v119
    %v159 = vunpack.c.l.b16 %v120
    %v160 = vunpack.c.h.b16 %v120
    %v161 = vunpack.c.l.b16 %v121
    %v162 = vunpack.c.h.b16 %v121
    %v163 = vunpack.c.l.b16 %v122
    %v164 = vunpack.c.h.b16 %v122
    %v165 = vunpack.c.l.b16 %v123
    %v166 = vunpack.c.h.b16 %v123
    %v167 = vunpack.c.l.b16 %v124
    %v168 = vunpack.c.h.b16 %v124
    %v169 = vunpack.c.l.b16 %v125
    %v170 = vunpack.c.h.b16 %v125
    %v171 = vunpack.c.l.b16 %v126
    %v172 = vunpack.c.h.b16 %v126
    %v173 = vunpack.c.l.b16 %v127
    %v174 = vunpack.c.h.b16 %v127
    %v175 = vunpack.c.l.b16 %v128
    %v176 = vunpack.c.h.b16 %v128
    %v177 = vpack.c.b16 %v147, %v145
    %v178 = vpack.c.b16 %v148, %v146
    %v179 = vpack.c.b16 %v151, %v149
    %v180 = vpack.c.b16 %v152, %v150
    %v181 = vpack.c.b16 %v155, %v153
    %v182 = vpack.c.b16 %v156, %v154
    %v183 = vpack.c.b16 %v159, %v157
    %v184 = vpack.c.b16 %v160, %v158
    %v185 = vpack.c.b16 %v163, %v161
    %v186 = vpack.c.b16 %v164, %v162
    %v187 = vpack.c.b16 %v167, %v165
    %v188 = vpack.c.b16 %v168, %v166
    %v189 = vpack.c.b16 %v171, %v169
    %v190 = vpack.c.b16 %v172, %v170
    %v191 = vpack.c.b16 %v175, %v173
    %v192 = vpack.c.b16 %v176, %v174
    %209 = vmatprep.subr.bf16.mxu0 %v192
    %210 = vmatpush1.bf16.msra.mxu0 %v191
    %211 = vmatprep.subr.bf16.mxu0 %v190
    %212 = vmatpush1.bf16.msra.mxu0 %v189
    %213 = vmatprep.subr.bf16.mxu0 %v188
    %214 = vmatpush1.bf16.msra.mxu0 %v187
    %215 = vmatprep.subr.bf16.mxu0 %v186
    %216 = vmatpush1.bf16.msra.mxu0 %v185
    %217 = vmatprep.subr.bf16.mxu0 %v184
    %218 = vmatpush1.bf16.msra.mxu0 %v183
    %219 = vmatprep.subr.bf16.mxu0 %v182
    %220 = vmatpush1.bf16.msra.mxu0 %v181
    %221 = vmatprep.subr.bf16.mxu0 %v180
    %222 = vmatpush1.bf16.msra.mxu0 %v179
    %223 = vmatprep.subr.bf16.mxu0 %v178
    %224 = vmatpush1.bf16.msra.mxu0 %v177
    %225 = vmatprep.subr.bf16.mxu0 0
    %226 = vmatpush2.bf16.msra.mxu0 0
    %227 = vmatprep.subr.bf16.mxu0 0
    %228 = vmatpush2.bf16.msra.mxu0 0
    %229 = vmatprep.subr.bf16.mxu0 0
    %230 = vmatpush2.bf16.msra.mxu0 0
    %231 = vmatprep.subr.bf16.mxu0 0
    %232 = vmatpush2.bf16.msra.mxu0 0
    %233 = vmatprep.subr.bf16.mxu0 0
    %234 = vmatpush2.bf16.msra.mxu0 0
    %235 = vmatprep.subr.bf16.mxu0 0
    %236 = vmatpush2.bf16.msra.mxu0 0
    %237 = vmatprep.subr.bf16.mxu0 0
    %238 = vmatpush2.bf16.msra.mxu0 0
    %239 = vmatprep.subr.bf16.mxu0 0
    %240 = vmatpush2.bf16.msra.mxu0 0
    %241 = vmatprep.mubr.bf16.mxu0 0
    %242 = vmatmul.mubr.bf16.gmra.mxu0 %v105
    %v243 = vpop.f32.mrf.mxu0
    %v244 = vadd.f32 0.0, %v243
    %v245 = vpop.f32.mrf.mxu0
    %v246 = vadd.f32 0.0, %v245
    %v247 = vpop.f32.mrf.mxu0
    %v248 = vadd.f32 0.0, %v247
    %v249 = vpop.f32.mrf.mxu0
    %v250 = vadd.f32 0.0, %v249
    %251 = vmatprep.mubr.bf16.mxu0 0
    %252 = vmatmul.mubr.bf16.gmra.mxu0 %v106
    %v253 = vpop.f32.mrf.mxu0
    %v254 = vadd.f32 0.0, %v253
    %v255 = vpop.f32.mrf.mxu0
    %v256 = vadd.f32 0.0, %v255
    %v257 = vpop.f32.mrf.mxu0
    %v258 = vadd.f32 0.0, %v257
    %v259 = vpop.f32.mrf.mxu0
    %v260 = vadd.f32 0.0, %v259
    %261 = vmatprep.mubr.bf16.mxu0 0
    %262 = vmatmul.mubr.bf16.gmra.mxu0 %v107
    %v263 = vpop.f32.mrf.mxu0
    %v264 = vadd.f32 0.0, %v263
    %v265 = vpop.f32.mrf.mxu0
    %v266 = vadd.f32 0.0, %v265
    %v267 = vpop.f32.mrf.mxu0
    %v268 = vadd.f32 0.0, %v267
    %v269 = vpop.f32.mrf.mxu0
    %v270 = vadd.f32 0.0, %v269
    %271 = vmatprep.mubr.bf16.mxu0 0
    %272 = vmatmul.mubr.bf16.gmra.mxu0 %v108
    %v273 = vpop.f32.mrf.mxu0
    %v274 = vadd.f32 0.0, %v273
    %v275 = vpop.f32.mrf.mxu0
    %v276 = vadd.f32 0.0, %v275
    %v277 = vpop.f32.mrf.mxu0
    %v278 = vadd.f32 0.0, %v277
    %v279 = vpop.f32.mrf.mxu0
    %v280 = vadd.f32 0.0, %v279
    %281 = vmatprep.mubr.bf16.mxu0 0
    %282 = vmatmul.mubr.bf16.gmra.mxu0 %v109
    %v283 = vpop.f32.mrf.mxu0
    %v284 = vadd.f32 0.0, %v283
    %v285 = vpop.f32.mrf.mxu0
    %v286 = vadd.f32 0.0, %v285
    %v287 = vpop.f32.mrf.mxu0
    %v288 = vadd.f32 0.0, %v287
    %v289 = vpop.f32.mrf.mxu0
    %v290 = vadd.f32 0.0, %v289
    %291 = vmatprep.mubr.bf16.mxu0 0
    %292 = vmatmul.mubr.bf16.gmra.mxu0 %v110
    %v293 = vpop.f32.mrf.mxu0
    %v294 = vadd.f32 0.0, %v293
    %v295 = vpop.f32.mrf.mxu0
    %v296 = vadd.f32 0.0, %v295
    %v297 = vpop.f32.mrf.mxu0
    %v298 = vadd.f32 0.0, %v297
    %v299 = vpop.f32.mrf.mxu0
    %v300 = vadd.f32 0.0, %v299
    %301 = vmatprep.mubr.bf16.mxu0 0
    %302 = vmatmul.mubr.bf16.gmra.mxu0 %v111
    %v303 = vpop.f32.mrf.mxu0
    %v304 = vadd.f32 0.0, %v303
    %v305 = vpop.f32.mrf.mxu0
    %v306 = vadd.f32 0.0, %v305
    %v307 = vpop.f32.mrf.mxu0
    %v308 = vadd.f32 0.0, %v307
    %v309 = vpop.f32.mrf.mxu0
    %v310 = vadd.f32 0.0, %v309
    %311 = vmatprep.mubr.bf16.mxu0 0
    %312 = vmatmul.mubr.bf16.gmra.mxu0 %v112
    %v313 = vpop.f32.mrf.mxu0
    %v314 = vadd.f32 0.0, %v313
    %v315 = vpop.f32.mrf.mxu0
    %v316 = vadd.f32 0.0, %v315
    %v317 = vpop.f32.mrf.mxu0
    %v318 = vadd.f32 0.0, %v317
    %v319 = vpop.f32.mrf.mxu0
    %v320 = vadd.f32 0.0, %v319
    %321 = vdwg.mxu0
    %v322 = vld [vmem:[%s2] sm:$0x3]
    %v323 = vld [vmem:[%s3] sm:$0x3]
    %v324 = vadd.f32 %v244, %v248
    %v325 = vadd.f32 %v324, %v254
    %v326 = vadd.f32 %v325, %v258
    %v327 = vadd.f32 %v326, %v264
    %v328 = vadd.f32 %v327, %v268
    %v329 = vadd.f32 %v328, %v274
    %v330 = vadd.f32 %v329, %v278
    %v331 = vadd.f32 %v330, %v284
    %v332 = vadd.f32 %v331, %v288
    %v333 = vadd.f32 %v332, %v294
    %v334 = vadd.f32 %v333, %v298
    %v335 = vadd.f32 %v334, %v304
    %v336 = vadd.f32 %v335, %v308
    %v337 = vadd.f32 %v336, %v314
    %v338 = vadd.f32 %v337, %v318
    %v339 = vrot.slane %v338, 4
    %v340 = vadd.f32 %v338, %v339
    %v341 = vrot.slane %v340, 2
    %v342 = vadd.f32 %v340, %v341
    %v343 = vrot.slane %v342, 1
    %v344 = vadd.f32 %v342, %v343
    %v345 = vadd.f32 %v246, %v250
    %v346 = vadd.f32 %v345, %v256
    %v347 = vadd.f32 %v346, %v260
    %v348 = vadd.f32 %v347, %v266
    %v349 = vadd.f32 %v348, %v270
    %v350 = vadd.f32 %v349, %v276
    %v351 = vadd.f32 %v350, %v280
    %v352 = vadd.f32 %v351, %v286
    %v353 = vadd.f32 %v352, %v290
    %v354 = vadd.f32 %v353, %v296
    %v355 = vadd.f32 %v354, %v300
    %v356 = vadd.f32 %v355, %v306
    %v357 = vadd.f32 %v356, %v310
    %v358 = vadd.f32 %v357, %v316
    %v359 = vadd.f32 %v358, %v320
    %v360 = vrot.slane %v359, 4
    %v361 = vadd.f32 %v359, %v360
    %v362 = vrot.slane %v361, 2
    %v363 = vadd.f32 %v361, %v362
    %v364 = vrot.slane %v363, 1
    %v365 = vadd.f32 %v363, %v364
    %v366 = vrcp.pop 128.0
    %v367 = vmul.f32 %v344, %v366
    %v368 = vmul.f32 %v365, %v366
    %v369 = vmul.f32 %v244, %v244
    %v370 = vmul.f32 %v246, %v246
    %v371 = vmul.f32 %v248, %v248
    %v372 = vmul.f32 %v250, %v250
    %v373 = vmul.f32 %v254, %v254
    %v374 = vmul.f32 %v256, %v256
    %v375 = vmul.f32 %v258, %v258
    %v376 = vmul.f32 %v260, %v260
    %v377 = vmul.f32 %v264, %v264
    %v378 = vmul.f32 %v266, %v266
    %v379 = vmul.f32 %v268, %v268
    %v380 = vmul.f32 %v270, %v270
    %v381 = vmul.f32 %v274, %v274
    %v382 = vmul.f32 %v276, %v276
    %v383 = vmul.f32 %v278, %v278
    %v384 = vmul.f32 %v280, %v280
    %v385 = vmul.f32 %v284, %v284
    %v386 = vmul.f32 %v286, %v286
    %v387 = vmul.f32 %v288, %v288
    %v388 = vmul.f32 %v290, %v290
    %v389 = vmul.f32 %v294, %v294
    %v390 = vmul.f32 %v296, %v296
    %v391 = vmul.f32 %v298, %v298
    %v392 = vmul.f32 %v300, %v300
    %v393 = vmul.f32 %v304, %v304
    %v394 = vmul.f32 %v306, %v306
    %v395 = vmul.f32 %v308, %v308
    %v396 = vmul.f32 %v310, %v310
    %v397 = vmul.f32 %v314, %v314
    %v398 = vmul.f32 %v316, %v316
    %v399 = vmul.f32 %v318, %v318
    %v400 = vmul.f32 %v320, %v320
    %v401 = vadd.f32 %v369, %v371
    %v402 = vadd.f32 %v401, %v373
    %v403 = vadd.f32 %v402, %v375
    %v404 = vadd.f32 %v403, %v377
    %v405 = vadd.f32 %v404, %v379
    %v406 = vadd.f32 %v405, %v381
    %v407 = vadd.f32 %v406, %v383
    %v408 = vadd.f32 %v407, %v385
    %v409 = vadd.f32 %v408, %v387
    %v410 = vadd.f32 %v409, %v389
    %v411 = vadd.f32 %v410, %v391
    %v412 = vadd.f32 %v411, %v393
    %v413 = vadd.f32 %v412, %v395
    %v414 = vadd.f32 %v413, %v397
    %v415 = vadd.f32 %v414, %v399
    %v416 = vrot.slane %v415, 4
    %v417 = vadd.f32 %v415, %v416
    %v418 = vrot.slane %v417, 2
    %v419 = vadd.f32 %v417, %v418
    %v420 = vrot.slane %v419, 1
    %v421 = vadd.f32 %v419, %v420
    %v422 = vadd.f32 %v370, %v372
    %v423 = vadd.f32 %v422, %v374
    %v424 = vadd.f32 %v423, %v376
    %v425 = vadd.f32 %v424, %v378
    %v426 = vadd.f32 %v425, %v380
    %v427 = vadd.f32 %v426, %v382
    %v428 = vadd.f32 %v427, %v384
    %v429 = vadd.f32 %v428, %v386
    %v430 = vadd.f32 %v429, %v388
    %v431 = vadd.f32 %v430, %v390
    %v432 = vadd.f32 %v431, %v392
    %v433 = vadd.f32 %v432, %v394
    %v434 = vadd.f32 %v433, %v396
    %v435 = vadd.f32 %v434, %v398
    %v436 = vadd.f32 %v435, %v400
    %v437 = vrot.slane %v436, 4
    %v438 = vadd.f32 %v436, %v437
    %v439 = vrot.slane %v438, 2
    %v440 = vadd.f32 %v438, %v439
    %v441 = vrot.slane %v440, 1
    %v442 = vadd.f32 %v440, %v441
    %v443 = vmul.f32 %v421, %v366
    %v444 = vmul.f32 %v442, %v366
    %v445 = vmul.f32 %v367, %v367
    %v446 = vmul.f32 %v368, %v368
    %v447 = vsub.f32 %v443, %v445
    %v448 = vsub.f32 %v444, %v446
    %v449 = vadd.f32 %v447, 1e-05
    %v450 = vadd.f32 %v448, 1e-05
    %v451 = vrsqrt.pop %v449
    %v452 = vrsqrt.pop %v450
    %v455 = vcombine.low %v451, %v452
    %v457 = vunpack.c.l.s4 1966171168
    %v458 = vunpack.c.0.s8 %v457
    %v459 = vlaneseq
    %v460 = vshrl.u32 %v459, 7
    %v461 = vsub.s32 %v458, %v460
    %v462 = vrot.slane %v455, %v461
    %v464 = vunpack.c.l.s4 1966171168
    %v465 = vunpack.c.0.s8 %v464
    %v466 = vlaneseq
    %v467 = vshrl.u32 %v466, 7
    %v468 = vsub.s32 %v465, %v467
    %v469 = vrot.slane %v462, %v468
    %v471 = vmul.f32 %v322, %v469
    %v473 = vlaneseq
    %v474 = vshrl.u32 %v473, 7
    %v475 = vsub.s32 0, %v474
    %v476 = vrot.slane %v471, %v475
    %v477 = vlaneseq
    %v478 = vshrl.u32 %v477, 7
    %v479 = vsub.s32 1, %v478
    %v480 = vrot.slane %v471, %v479
    %v483 = vmul.f32 %v367, %v476
    %v484 = vmul.f32 %v368, %v480
    %v487 = vcombine.low %v483, %v484
    %v489 = vunpack.c.l.s4 1966171168
    %v490 = vunpack.c.0.s8 %v489
    %v491 = vlaneseq
    %v492 = vshrl.u32 %v491, 7
    %v493 = vsub.s32 %v490, %v492
    %v494 = vrot.slane %v487, %v493
    %v496 = vunpack.c.l.s4 1966171168
    %v497 = vunpack.c.0.s8 %v496
    %v498 = vlaneseq
    %v499 = vshrl.u32 %v498, 7
    %v500 = vsub.s32 %v497, %v499
    %v501 = vrot.slane %v494, %v500
    %v503 = vsub.f32 %v323, %v501
    %v504 = vmul.f32 %v244, %v476
    %v505 = vmul.f32 %v246, %v480
    %v506 = vmul.f32 %v248, %v476
    %v507 = vmul.f32 %v250, %v480
    %v508 = vmul.f32 %v254, %v476
    %v509 = vmul.f32 %v256, %v480
    %v510 = vmul.f32 %v258, %v476
    %v511 = vmul.f32 %v260, %v480
    %v512 = vmul.f32 %v264, %v476
    %v513 = vmul.f32 %v266, %v480
    %v514 = vmul.f32 %v268, %v476
    %v515 = vmul.f32 %v270, %v480
    %v516 = vmul.f32 %v274, %v476
    %v517 = vmul.f32 %v276, %v480
    %v518 = vmul.f32 %v278, %v476
    %v519 = vmul.f32 %v280, %v480
    %v520 = vmul.f32 %v284, %v476
    %v521 = vmul.f32 %v286, %v480
    %v522 = vmul.f32 %v288, %v476
    %v523 = vmul.f32 %v290, %v480
    %v524 = vmul.f32 %v294, %v476
    %v525 = vmul.f32 %v296, %v480
    %v526 = vmul.f32 %v298, %v476
    %v527 = vmul.f32 %v300, %v480
    %v528 = vmul.f32 %v304, %v476
    %v529 = vmul.f32 %v306, %v480
    %v530 = vmul.f32 %v308, %v476
    %v531 = vmul.f32 %v310, %v480
    %v532 = vmul.f32 %v314, %v476
    %v533 = vmul.f32 %v316, %v480
    %v534 = vmul.f32 %v318, %v476
    %v535 = vmul.f32 %v320, %v480
    %v537 = vlaneseq
    %v538 = vshrl.u32 %v537, 7
    %v539 = vsub.s32 0, %v538
    %v540 = vrot.slane %v503, %v539
    %v541 = vlaneseq
    %v542 = vshrl.u32 %v541, 7
    %v543 = vsub.s32 1, %v542
    %v544 = vrot.slane %v503, %v543
    %v547 = vadd.f32 %v504, %v540
    %v548 = vadd.f32 %v505, %v544
    %v549 = vadd.f32 %v506, %v540
    %v550 = vadd.f32 %v507, %v544
    %v551 = vadd.f32 %v508, %v540
    %v552 = vadd.f32 %v509, %v544
    %v553 = vadd.f32 %v510, %v540
    %v554 = vadd.f32 %v511, %v544
    %v555 = vadd.f32 %v512, %v540
    %v556 = vadd.f32 %v513, %v544
    %v557 = vadd.f32 %v514, %v540
    %v558 = vadd.f32 %v515, %v544
    %v559 = vadd.f32 %v516, %v540
    %v560 = vadd.f32 %v517, %v544
    %v561 = vadd.f32 %v518, %v540
    %v562 = vadd.f32 %v519, %v544
    %v563 = vadd.f32 %v520, %v540
    %v564 = vadd.f32 %v521, %v544
    %v565 = vadd.f32 %v522, %v540
    %v566 = vadd.f32 %v523, %v544
    %v567 = vadd.f32 %v524, %v540
    %v568 = vadd.f32 %v525, %v544
    %v569 = vadd.f32 %v526, %v540
    %v570 = vadd.f32 %v527, %v544
    %v571 = vadd.f32 %v528, %v540
    %v572 = vadd.f32 %v529, %v544
    %v573 = vadd.f32 %v530, %v540
    %v574 = vadd.f32 %v531, %v544
    %v575 = vadd.f32 %v532, %v540
    %v576 = vadd.f32 %v533, %v544
    %v577 = vadd.f32 %v534, %v540
    %v578 = vadd.f32 %v535, %v544
    %v579 = vmax.f32 %v547, 0.0
    %v580 = vmax.f32 %v548, 0.0
    %v581 = vmax.f32 %v549, 0.0
    %v582 = vmax.f32 %v550, 0.0
    %v583 = vmax.f32 %v551, 0.0
    %v584 = vmax.f32 %v552, 0.0
    %v585 = vmax.f32 %v553, 0.0
    %v586 = vmax.f32 %v554, 0.0
    %v587 = vmax.f32 %v555, 0.0
    %v588 = vmax.f32 %v556, 0.0
    %v589 = vmax.f32 %v557, 0.0
    %v590 = vmax.f32 %v558, 0.0
    %v591 = vmax.f32 %v559, 0.0
    %v592 = vmax.f32 %v560, 0.0
    %v593 = vmax.f32 %v561, 0.0
    %v594 = vmax.f32 %v562, 0.0
    %v595 = vmax.f32 %v563, 0.0
    %v596 = vmax.f32 %v564, 0.0
    %v597 = vmax.f32 %v565, 0.0
    %v598 = vmax.f32 %v566, 0.0
    %v599 = vmax.f32 %v567, 0.0
    %v600 = vmax.f32 %v568, 0.0
    %v601 = vmax.f32 %v569, 0.0
    %v602 = vmax.f32 %v570, 0.0
    %v603 = vmax.f32 %v571, 0.0
    %v604 = vmax.f32 %v572, 0.0
    %v605 = vmax.f32 %v573, 0.0
    %v606 = vmax.f32 %v574, 0.0
    %v607 = vmax.f32 %v575, 0.0
    %v608 = vmax.f32 %v576, 0.0
    %v609 = vmax.f32 %v577, 0.0
    %v610 = vmax.f32 %v578, 0.0
    %v611 = vlaneseq
    %v612 = vshrl.u32 %v611, 7
    %v613 = vadd.s32 %v612, 8
    %v614 = vadd.s32 %v612, 16
    %v615 = vadd.s32 %v612, 24
    %v616 = vadd.s32 %v612, 32
    %v617 = vadd.s32 %v612, 40
    %v618 = vadd.s32 %v612, 48
    %v619 = vadd.s32 %v612, 56
    %v620 = vadd.s32 %v612, 64
    %v621 = vadd.s32 %v612, 72
    %v622 = vadd.s32 %v612, 80
    %v623 = vadd.s32 %v612, 88
    %v624 = vadd.s32 %v612, 96
    %v625 = vadd.s32 %v612, 104
    %v626 = vadd.s32 %v612, 112
    %v627 = vadd.s32 %v612, 120
    %v628 = vlaneseq
    %v629 = vand.u32 %v628, 127
    %v630 = vadd.s32 %v629, 128
    %v631 = vmul.u32 %v612, 256
    %v632 = vmul.u32 %v613, 256
    %v633 = vmul.u32 %v614, 256
    %v634 = vmul.u32 %v615, 256
    %v635 = vmul.u32 %v616, 256
    %v636 = vmul.u32 %v617, 256
    %v637 = vmul.u32 %v618, 256
    %v638 = vmul.u32 %v619, 256
    %v639 = vmul.u32 %v620, 256
    %v640 = vmul.u32 %v621, 256
    %v641 = vmul.u32 %v622, 256
    %v642 = vmul.u32 %v623, 256
    %v643 = vmul.u32 %v624, 256
    %v644 = vmul.u32 %v625, 256
    %v645 = vmul.u32 %v626, 256
    %v646 = vmul.u32 %v627, 256
    %v647 = vadd.s32 %v631, %v629
    %v648 = vadd.s32 %v631, %v630
    %v649 = vadd.s32 %v632, %v629
    %v650 = vadd.s32 %v632, %v630
    %v651 = vadd.s32 %v633, %v629
    %v652 = vadd.s32 %v633, %v630
    %v653 = vadd.s32 %v634, %v629
    %v654 = vadd.s32 %v634, %v630
    %v655 = vadd.s32 %v635, %v629
    %v656 = vadd.s32 %v635, %v630
    %v657 = vadd.s32 %v636, %v629
    %v658 = vadd.s32 %v636, %v630
    %v659 = vadd.s32 %v637, %v629
    %v660 = vadd.s32 %v637, %v630
    %v661 = vadd.s32 %v638, %v629
    %v662 = vadd.s32 %v638, %v630
    %v663 = vadd.s32 %v639, %v629
    %v664 = vadd.s32 %v639, %v630
    %v665 = vadd.s32 %v640, %v629
    %v666 = vadd.s32 %v640, %v630
    %v667 = vadd.s32 %v641, %v629
    %v668 = vadd.s32 %v641, %v630
    %v669 = vadd.s32 %v642, %v629
    %v670 = vadd.s32 %v642, %v630
    %v671 = vadd.s32 %v643, %v629
    %v672 = vadd.s32 %v643, %v630
    %v673 = vadd.s32 %v644, %v629
    %v674 = vadd.s32 %v644, %v630
    %v675 = vadd.s32 %v645, %v629
    %v676 = vadd.s32 %v645, %v630
    %v677 = vadd.s32 %v646, %v629
    %v678 = vadd.s32 %v646, %v630
    %v679 = vxor.u32 %v647, 608135816
    %v680 = vxor.u32 %v648, 608135816
    %v681 = vxor.u32 %v649, 608135816
    %v682 = vxor.u32 %v650, 608135816
    %v683 = vxor.u32 %v651, 608135816
    %v684 = vxor.u32 %v652, 608135816
    %v685 = vxor.u32 %v653, 608135816
    %v686 = vxor.u32 %v654, 608135816
    %v687 = vxor.u32 %v655, 608135816
    %v688 = vxor.u32 %v656, 608135816
    %v689 = vxor.u32 %v657, 608135816
    %v690 = vxor.u32 %v658, 608135816
    %v691 = vxor.u32 %v659, 608135816
    %v692 = vxor.u32 %v660, 608135816
    %v693 = vxor.u32 %v661, 608135816
    %v694 = vxor.u32 %v662, 608135816
    %v695 = vxor.u32 %v663, 608135816
    %v696 = vxor.u32 %v664, 608135816
    %v697 = vxor.u32 %v665, 608135816
    %v698 = vxor.u32 %v666, 608135816
    %v699 = vxor.u32 %v667, 608135816
    %v700 = vxor.u32 %v668, 608135816
    %v701 = vxor.u32 %v669, 608135816
    %v702 = vxor.u32 %v670, 608135816
    %v703 = vxor.u32 %v671, 608135816
    %v704 = vxor.u32 %v672, 608135816
    %v705 = vxor.u32 %v673, 608135816
    %v706 = vxor.u32 %v674, 608135816
    %v707 = vxor.u32 %v675, 608135816
    %v708 = vxor.u32 %v676, 608135816
    %v709 = vxor.u32 %v677, 608135816
    %v710 = vxor.u32 %v678, 608135816
    %v711 = vshrl.u32 %v679, 16
    %v712 = vshrl.u32 %v680, 16
    %v713 = vshrl.u32 %v681, 16
    %v714 = vshrl.u32 %v682, 16
    %v715 = vshrl.u32 %v683, 16
    %v716 = vshrl.u32 %v684, 16
    %v717 = vshrl.u32 %v685, 16
    %v718 = vshrl.u32 %v686, 16
    %v719 = vshrl.u32 %v687, 16
    %v720 = vshrl.u32 %v688, 16
    %v721 = vshrl.u32 %v689, 16
    %v722 = vshrl.u32 %v690, 16
    %v723 = vshrl.u32 %v691, 16
    %v724 = vshrl.u32 %v692, 16
    %v725 = vshrl.u32 %v693, 16
    %v726 = vshrl.u32 %v694, 16
    %v727 = vshrl.u32 %v695, 16
    %v728 = vshrl.u32 %v696, 16
    %v729 = vshrl.u32 %v697, 16
    %v730 = vshrl.u32 %v698, 16
    %v731 = vshrl.u32 %v699, 16
    %v732 = vshrl.u32 %v700, 16
    %v733 = vshrl.u32 %v701, 16
    %v734 = vshrl.u32 %v702, 16
    %v735 = vshrl.u32 %v703, 16
    %v736 = vshrl.u32 %v704, 16
    %v737 = vshrl.u32 %v705, 16
    %v738 = vshrl.u32 %v706, 16
    %v739 = vshrl.u32 %v707, 16
    %v740 = vshrl.u32 %v708, 16
    %v741 = vshrl.u32 %v709, 16
    %v742 = vshrl.u32 %v710, 16
    %v743 = vxor.u32 %v679, %v711
    %v744 = vxor.u32 %v680, %v712
    %v745 = vxor.u32 %v681, %v713
    %v746 = vxor.u32 %v682, %v714
    %v747 = vxor.u32 %v683, %v715
    %v748 = vxor.u32 %v684, %v716
    %v749 = vxor.u32 %v685, %v717
    %v750 = vxor.u32 %v686, %v718
    %v751 = vxor.u32 %v687, %v719
    %v752 = vxor.u32 %v688, %v720
    %v753 = vxor.u32 %v689, %v721
    %v754 = vxor.u32 %v690, %v722
    %v755 = vxor.u32 %v691, %v723
    %v756 = vxor.u32 %v692, %v724
    %v757 = vxor.u32 %v693, %v725
    %v758 = vxor.u32 %v694, %v726
    %v759 = vxor.u32 %v695, %v727
    %v760 = vxor.u32 %v696, %v728
    %v761 = vxor.u32 %v697, %v729
    %v762 = vxor.u32 %v698, %v730
    %v763 = vxor.u32 %v699, %v731
    %v764 = vxor.u32 %v700, %v732
    %v765 = vxor.u32 %v701, %v733
    %v766 = vxor.u32 %v702, %v734
    %v767 = vxor.u32 %v703, %v735
    %v768 = vxor.u32 %v704, %v736
    %v769 = vxor.u32 %v705, %v737
    %v770 = vxor.u32 %v706, %v738
    %v771 = vxor.u32 %v707, %v739
    %v772 = vxor.u32 %v708, %v740
    %v773 = vxor.u32 %v709, %v741
    %v774 = vxor.u32 %v710, %v742
    %v775 = vmul.u32 %v743, 2146121005
    %v776 = vmul.u32 %v744, 2146121005
    %v777 = vmul.u32 %v745, 2146121005
    %v778 = vmul.u32 %v746, 2146121005
    %v779 = vmul.u32 %v747, 2146121005
    %v780 = vmul.u32 %v748, 2146121005
    %v781 = vmul.u32 %v749, 2146121005
    %v782 = vmul.u32 %v750, 2146121005
    %v783 = vmul.u32 %v751, 2146121005
    %v784 = vmul.u32 %v752, 2146121005
    %v785 = vmul.u32 %v753, 2146121005
    %v786 = vmul.u32 %v754, 2146121005
    %v787 = vmul.u32 %v755, 2146121005
    %v788 = vmul.u32 %v756, 2146121005
    %v789 = vmul.u32 %v757, 2146121005
    %v790 = vmul.u32 %v758, 2146121005
    %v791 = vmul.u32 %v759, 2146121005
    %v792 = vmul.u32 %v760, 2146121005
    %v793 = vmul.u32 %v761, 2146121005
    %v794 = vmul.u32 %v762, 2146121005
    %v795 = vmul.u32 %v763, 2146121005
    %v796 = vmul.u32 %v764, 2146121005
    %v797 = vmul.u32 %v765, 2146121005
    %v798 = vmul.u32 %v766, 2146121005
    %v799 = vmul.u32 %v767, 2146121005
    %v800 = vmul.u32 %v768, 2146121005
    %v801 = vmul.u32 %v769, 2146121005
    %v802 = vmul.u32 %v770, 2146121005
    %v803 = vmul.u32 %v771, 2146121005
    %v804 = vmul.u32 %v772, 2146121005
    %v805 = vmul.u32 %v773, 2146121005
    %v806 = vmul.u32 %v774, 2146121005
    %v807 = vshrl.u32 %v775, 15
    %v808 = vshrl.u32 %v776, 15
    %v809 = vshrl.u32 %v777, 15
    %v810 = vshrl.u32 %v778, 15
    %v811 = vshrl.u32 %v779, 15
    %v812 = vshrl.u32 %v780, 15
    %v813 = vshrl.u32 %v781, 15
    %v814 = vshrl.u32 %v782, 15
    %v815 = vshrl.u32 %v783, 15
    %v816 = vshrl.u32 %v784, 15
    %v817 = vshrl.u32 %v785, 15
    %v818 = vshrl.u32 %v786, 15
    %v819 = vshrl.u32 %v787, 15
    %v820 = vshrl.u32 %v788, 15
    %v821 = vshrl.u32 %v789, 15
    %v822 = vshrl.u32 %v790, 15
    %v823 = vshrl.u32 %v791, 15
    %v824 = vshrl.u32 %v792, 15
    %v825 = vshrl.u32 %v793, 15
    %v826 = vshrl.u32 %v794, 15
    %v827 = vshrl.u32 %v795, 15
    %v828 = vshrl.u32 %v796, 15
    %v829 = vshrl.u32 %v797, 15
    %v830 = vshrl.u32 %v798, 15
    %v831 = vshrl.u32 %v799, 15
    %v832 = vshrl.u32 %v800, 15
    %v833 = vshrl.u32 %v801, 15
    %v834 = vshrl.u32 %v802, 15
    %v835 = vshrl.u32 %v803, 15
    %v836 = vshrl.u32 %v804, 15
    %v837 = vshrl.u32 %v805, 15
    %v838 = vshrl.u32 %v806, 15
    %v839 = vxor.u32 %v775, %v807
    %v840 = vxor.u32 %v776, %v808
    %v841 = vxor.u32 %v777, %v809
    %v842 = vxor.u32 %v778, %v810
    %v843 = vxor.u32 %v779, %v811
    %v844 = vxor.u32 %v780, %v812
    %v845 = vxor.u32 %v781, %v813
    %v846 = vxor.u32 %v782, %v814
    %v847 = vxor.u32 %v783, %v815
    %v848 = vxor.u32 %v784, %v816
    %v849 = vxor.u32 %v785, %v817
    %v850 = vxor.u32 %v786, %v818
    %v851 = vxor.u32 %v787, %v819
    %v852 = vxor.u32 %v788, %v820
    %v853 = vxor.u32 %v789, %v821
    %v854 = vxor.u32 %v790, %v822
    %v855 = vxor.u32 %v791, %v823
    %v856 = vxor.u32 %v792, %v824
    %v857 = vxor.u32 %v793, %v825
    %v858 = vxor.u32 %v794, %v826
    %v859 = vxor.u32 %v795, %v827
    %v860 = vxor.u32 %v796, %v828
    %v861 = vxor.u32 %v797, %v829
    %v862 = vxor.u32 %v798, %v830
    %v863 = vxor.u32 %v799, %v831
    %v864 = vxor.u32 %v800, %v832
    %v865 = vxor.u32 %v801, %v833
    %v866 = vxor.u32 %v802, %v834
    %v867 = vxor.u32 %v803, %v835
    %v868 = vxor.u32 %v804, %v836
    %v869 = vxor.u32 %v805, %v837
    %v870 = vxor.u32 %v806, %v838
    %v871 = vmul.u32 %v839, 2221713035
    %v872 = vmul.u32 %v840, 2221713035
    %v873 = vmul.u32 %v841, 2221713035
    %v874 = vmul.u32 %v842, 2221713035
    %v875 = vmul.u32 %v843, 2221713035
    %v876 = vmul.u32 %v844, 2221713035
    %v877 = vmul.u32 %v845, 2221713035
    %v878 = vmul.u32 %v846, 2221713035
    %v879 = vmul.u32 %v847, 2221713035
    %v880 = vmul.u32 %v848, 2221713035
    %v881 = vmul.u32 %v849, 2221713035
    %v882 = vmul.u32 %v850, 2221713035
    %v883 = vmul.u32 %v851, 2221713035
    %v884 = vmul.u32 %v852, 2221713035
    %v885 = vmul.u32 %v853, 2221713035
    %v886 = vmul.u32 %v854, 2221713035
    %v887 = vmul.u32 %v855, 2221713035
    %v888 = vmul.u32 %v856, 2221713035
    %v889 = vmul.u32 %v857, 2221713035
    %v890 = vmul.u32 %v858, 2221713035
    %v891 = vmul.u32 %v859, 2221713035
    %v892 = vmul.u32 %v860, 2221713035
    %v893 = vmul.u32 %v861, 2221713035
    %v894 = vmul.u32 %v862, 2221713035
    %v895 = vmul.u32 %v863, 2221713035
    %v896 = vmul.u32 %v864, 2221713035
    %v897 = vmul.u32 %v865, 2221713035
    %v898 = vmul.u32 %v866, 2221713035
    %v899 = vmul.u32 %v867, 2221713035
    %v900 = vmul.u32 %v868, 2221713035
    %v901 = vmul.u32 %v869, 2221713035
    %v902 = vmul.u32 %v870, 2221713035
    %v903 = vshrl.u32 %v871, 16
    %v904 = vshrl.u32 %v872, 16
    %v905 = vshrl.u32 %v873, 16
    %v906 = vshrl.u32 %v874, 16
    %v907 = vshrl.u32 %v875, 16
    %v908 = vshrl.u32 %v876, 16
    %v909 = vshrl.u32 %v877, 16
    %v910 = vshrl.u32 %v878, 16
    %v911 = vshrl.u32 %v879, 16
    %v912 = vshrl.u32 %v880, 16
    %v913 = vshrl.u32 %v881, 16
    %v914 = vshrl.u32 %v882, 16
    %v915 = vshrl.u32 %v883, 16
    %v916 = vshrl.u32 %v884, 16
    %v917 = vshrl.u32 %v885, 16
    %v918 = vshrl.u32 %v886, 16
    %v919 = vshrl.u32 %v887, 16
    %v920 = vshrl.u32 %v888, 16
    %v921 = vshrl.u32 %v889, 16
    %v922 = vshrl.u32 %v890, 16
    %v923 = vshrl.u32 %v891, 16
    %v924 = vshrl.u32 %v892, 16
    %v925 = vshrl.u32 %v893, 16
    %v926 = vshrl.u32 %v894, 16
    %v927 = vshrl.u32 %v895, 16
    %v928 = vshrl.u32 %v896, 16
    %v929 = vshrl.u32 %v897, 16
    %v930 = vshrl.u32 %v898, 16
    %v931 = vshrl.u32 %v899, 16
    %v932 = vshrl.u32 %v900, 16
    %v933 = vshrl.u32 %v901, 16
    %v934 = vshrl.u32 %v902, 16
    %v935 = vxor.u32 %v871, %v903
    %v936 = vxor.u32 %v872, %v904
    %v937 = vxor.u32 %v873, %v905
    %v938 = vxor.u32 %v874, %v906
    %v939 = vxor.u32 %v875, %v907
    %v940 = vxor.u32 %v876, %v908
    %v941 = vxor.u32 %v877, %v909
    %v942 = vxor.u32 %v878, %v910
    %v943 = vxor.u32 %v879, %v911
    %v944 = vxor.u32 %v880, %v912
    %v945 = vxor.u32 %v881, %v913
    %v946 = vxor.u32 %v882, %v914
    %v947 = vxor.u32 %v883, %v915
    %v948 = vxor.u32 %v884, %v916
    %v949 = vxor.u32 %v885, %v917
    %v950 = vxor.u32 %v886, %v918
    %v951 = vxor.u32 %v887, %v919
    %v952 = vxor.u32 %v888, %v920
    %v953 = vxor.u32 %v889, %v921
    %v954 = vxor.u32 %v890, %v922
    %v955 = vxor.u32 %v891, %v923
    %v956 = vxor.u32 %v892, %v924
    %v957 = vxor.u32 %v893, %v925
    %v958 = vxor.u32 %v894, %v926
    %v959 = vxor.u32 %v895, %v927
    %v960 = vxor.u32 %v896, %v928
    %v961 = vxor.u32 %v897, %v929
    %v962 = vxor.u32 %v898, %v930
    %v963 = vxor.u32 %v899, %v931
    %v964 = vxor.u32 %v900, %v932
    %v965 = vxor.u32 %v901, %v933
    %v966 = vxor.u32 %v902, %v934
    %v967 = vshrl.u32 %v935, 8
    %v968 = vshrl.u32 %v936, 8
    %v969 = vshrl.u32 %v937, 8
    %v970 = vshrl.u32 %v938, 8
    %v971 = vshrl.u32 %v939, 8
    %v972 = vshrl.u32 %v940, 8
    %v973 = vshrl.u32 %v941, 8
    %v974 = vshrl.u32 %v942, 8
    %v975 = vshrl.u32 %v943, 8
    %v976 = vshrl.u32 %v944, 8
    %v977 = vshrl.u32 %v945, 8
    %v978 = vshrl.u32 %v946, 8
    %v979 = vshrl.u32 %v947, 8
    %v980 = vshrl.u32 %v948, 8
    %v981 = vshrl.u32 %v949, 8
    %v982 = vshrl.u32 %v950, 8
    %v983 = vshrl.u32 %v951, 8
    %v984 = vshrl.u32 %v952, 8
    %v985 = vshrl.u32 %v953, 8
    %v986 = vshrl.u32 %v954, 8
    %v987 = vshrl.u32 %v955, 8
    %v988 = vshrl.u32 %v956, 8
    %v989 = vshrl.u32 %v957, 8
    %v990 = vshrl.u32 %v958, 8
    %v991 = vshrl.u32 %v959, 8
    %v992 = vshrl.u32 %v960, 8
    %v993 = vshrl.u32 %v961, 8
    %v994 = vshrl.u32 %v962, 8
    %v995 = vshrl.u32 %v963, 8
    %v996 = vshrl.u32 %v964, 8
    %v997 = vshrl.u32 %v965, 8
    %v998 = vshrl.u32 %v966, 8
    %vm999 = vcmp.ge.s32.totalorder %v967, 8388608
    %vm1000 = vcmp.ge.s32.totalorder %v968, 8388608
    %vm1001 = vcmp.ge.s32.totalorder %v969, 8388608
    %vm1002 = vcmp.ge.s32.totalorder %v970, 8388608
    %vm1003 = vcmp.ge.s32.totalorder %v971, 8388608
    %vm1004 = vcmp.ge.s32.totalorder %v972, 8388608
    %vm1005 = vcmp.ge.s32.totalorder %v973, 8388608
    %vm1006 = vcmp.ge.s32.totalorder %v974, 8388608
    %vm1007 = vcmp.ge.s32.totalorder %v975, 8388608
    %vm1008 = vcmp.ge.s32.totalorder %v976, 8388608
    %vm1009 = vcmp.ge.s32.totalorder %v977, 8388608
    %vm1010 = vcmp.ge.s32.totalorder %v978, 8388608
    %vm1011 = vcmp.ge.s32.totalorder %v979, 8388608
    %vm1012 = vcmp.ge.s32.totalorder %v980, 8388608
    %vm1013 = vcmp.ge.s32.totalorder %v981, 8388608
    %vm1014 = vcmp.ge.s32.totalorder %v982, 8388608
    %vm1015 = vcmp.ge.s32.totalorder %v983, 8388608
    %vm1016 = vcmp.ge.s32.totalorder %v984, 8388608
    %vm1017 = vcmp.ge.s32.totalorder %v985, 8388608
    %vm1018 = vcmp.ge.s32.totalorder %v986, 8388608
    %vm1019 = vcmp.ge.s32.totalorder %v987, 8388608
    %vm1020 = vcmp.ge.s32.totalorder %v988, 8388608
    %vm1021 = vcmp.ge.s32.totalorder %v989, 8388608
    %vm1022 = vcmp.ge.s32.totalorder %v990, 8388608
    %vm1023 = vcmp.ge.s32.totalorder %v991, 8388608
    %vm1024 = vcmp.ge.s32.totalorder %v992, 8388608
    %vm1025 = vcmp.ge.s32.totalorder %v993, 8388608
    %vm1026 = vcmp.ge.s32.totalorder %v994, 8388608
    %vm1027 = vcmp.ge.s32.totalorder %v995, 8388608
    %vm1028 = vcmp.ge.s32.totalorder %v996, 8388608
    %vm1029 = vcmp.ge.s32.totalorder %v997, 8388608
    %vm1030 = vcmp.ge.s32.totalorder %v998, 8388608
    %v1031 = vsel %vm999, %v579, 0.0
    %v1032 = vsel %vm1000, %v580, 0.0
    %v1033 = vsel %vm1001, %v581, 0.0
    %v1034 = vsel %vm1002, %v582, 0.0
    %v1035 = vsel %vm1003, %v583, 0.0
    %v1036 = vsel %vm1004, %v584, 0.0
    %v1037 = vsel %vm1005, %v585, 0.0
    %v1038 = vsel %vm1006, %v586, 0.0
    %v1039 = vsel %vm1007, %v587, 0.0
    %v1040 = vsel %vm1008, %v588, 0.0
    %v1041 = vsel %vm1009, %v589, 0.0
    %v1042 = vsel %vm1010, %v590, 0.0
    %v1043 = vsel %vm1011, %v591, 0.0
    %v1044 = vsel %vm1012, %v592, 0.0
    %v1045 = vsel %vm1013, %v593, 0.0
    %v1046 = vsel %vm1014, %v594, 0.0
    %v1047 = vsel %vm1015, %v595, 0.0
    %v1048 = vsel %vm1016, %v596, 0.0
    %v1049 = vsel %vm1017, %v597, 0.0
    %v1050 = vsel %vm1018, %v598, 0.0
    %v1051 = vsel %vm1019, %v599, 0.0
    %v1052 = vsel %vm1020, %v600, 0.0
    %v1053 = vsel %vm1021, %v601, 0.0
    %v1054 = vsel %vm1022, %v602, 0.0
    %v1055 = vsel %vm1023, %v603, 0.0
    %v1056 = vsel %vm1024, %v604, 0.0
    %v1057 = vsel %vm1025, %v605, 0.0
    %v1058 = vsel %vm1026, %v606, 0.0
    %v1059 = vsel %vm1027, %v607, 0.0
    %v1060 = vsel %vm1028, %v608, 0.0
    %v1061 = vsel %vm1029, %v609, 0.0
    %v1062 = vsel %vm1030, %v610, 0.0
    %v1063 = vpack.c.bf16 %v1033, %v1031
    %v1064 = vpack.c.bf16 %v1034, %v1032
    %v1065 = vpack.c.bf16 %v1037, %v1035
    %v1066 = vpack.c.bf16 %v1038, %v1036
    %v1067 = vpack.c.bf16 %v1041, %v1039
    %v1068 = vpack.c.bf16 %v1042, %v1040
    %v1069 = vpack.c.bf16 %v1045, %v1043
    %v1070 = vpack.c.bf16 %v1046, %v1044
    %v1071 = vpack.c.bf16 %v1049, %v1047
    %v1072 = vpack.c.bf16 %v1050, %v1048
    %v1073 = vpack.c.bf16 %v1053, %v1051
    %v1074 = vpack.c.bf16 %v1054, %v1052
    %v1075 = vpack.c.bf16 %v1057, %v1055
    %v1076 = vpack.c.bf16 %v1058, %v1056
    %v1077 = vpack.c.bf16 %v1061, %v1059
    %v1078 = vpack.c.bf16 %v1062, %v1060
    %v1079 = vld [vmem:[#allocation7] sm:$0xff]
    %v1080 = vld [vmem:[#allocation7 + $0x8] sm:$0xff]
    %v1081 = vld [vmem:[#allocation7 + $0x10] sm:$0xff]
    %v1082 = vld [vmem:[#allocation7 + $0x18] sm:$0xff]
    %v1083 = vld [vmem:[#allocation7 + $0x20] sm:$0xff]
    %v1084 = vld [vmem:[#allocation7 + $0x28] sm:$0xff]
    %v1085 = vld [vmem:[#allocation7 + $0x30] sm:$0xff]
    %v1086 = vld [vmem:[#allocation7 + $0x38] sm:$0xff]
    %v1087 = vld [vmem:[#allocation7 + $0x40] sm:$0xff]
    %v1088 = vld [vmem:[#allocation7 + $0x48] sm:$0xff]
    %v1089 = vld [vmem:[#allocation7 + $0x50] sm:$0xff]
    %v1090 = vld [vmem:[#allocation7 + $0x58] sm:$0xff]
    %v1091 = vld [vmem:[#allocation7 + $0x60] sm:$0xff]
    %v1092 = vld [vmem:[#allocation7 + $0x68] sm:$0xff]
    %v1093 = vld [vmem:[#allocation7 + $0x70] sm:$0xff]
    %v1094 = vld [vmem:[#allocation7 + $0x78] sm:$0xff]
    %v1095 = vld [vmem:[#allocation7 + $0x80] sm:$0xff]
    %v1096 = vld [vmem:[#allocation7 + $0x88] sm:$0xff]
    %v1097 = vld [vmem:[#allocation7 + $0x90] sm:$0xff]
    %v1098 = vld [vmem:[#allocation7 + $0x98] sm:$0xff]
    %v1099 = vld [vmem:[#allocation7 + $0xa0] sm:$0xff]
    %v1100 = vld [vmem:[#allocation7 + $0xa8] sm:$0xff]
    %v1101 = vld [vmem:[#allocation7 + $0xb0] sm:$0xff]
    %v1102 = vld [vmem:[#allocation7 + $0xb8] sm:$0xff]
    %v1103 = vld [vmem:[#allocation7 + $0xc0] sm:$0xff]
    %v1104 = vld [vmem:[#allocation7 + $0xc8] sm:$0xff]
    %v1105 = vld [vmem:[#allocation7 + $0xd0] sm:$0xff]
    %v1106 = vld [vmem:[#allocation7 + $0xd8] sm:$0xff]
    %v1107 = vld [vmem:[#allocation7 + $0xe0] sm:$0xff]
    %v1108 = vld [vmem:[#allocation7 + $0xe8] sm:$0xff]
    %v1109 = vld [vmem:[#allocation7 + $0xf0] sm:$0xff]
    %v1110 = vld [vmem:[#allocation7 + $0xf8] sm:$0xff]
    %v1143 = vunpack.c.l.b16 %v1079
    %v1144 = vunpack.c.h.b16 %v1079
    %v1145 = vunpack.c.l.b16 %v1080
    %v1146 = vunpack.c.h.b16 %v1080
    %v1147 = vunpack.c.l.b16 %v1081
    %v1148 = vunpack.c.h.b16 %v1081
    %v1149 = vunpack.c.l.b16 %v1082
    %v1150 = vunpack.c.h.b16 %v1082
    %v1151 = vunpack.c.l.b16 %v1083
    %v1152 = vunpack.c.h.b16 %v1083
    %v1153 = vunpack.c.l.b16 %v1084
    %v1154 = vunpack.c.h.b16 %v1084
    %v1155 = vunpack.c.l.b16 %v1085
    %v1156 = vunpack.c.h.b16 %v1085
    %v1157 = vunpack.c.l.b16 %v1086
    %v1158 = vunpack.c.h.b16 %v1086
    %v1159 = vunpack.c.l.b16 %v1087
    %v1160 = vunpack.c.h.b16 %v1087
    %v1161 = vunpack.c.l.b16 %v1088
    %v1162 = vunpack.c.h.b16 %v1088
    %v1163 = vunpack.c.l.b16 %v1089
    %v1164 = vunpack.c.h.b16 %v1089
    %v1165 = vunpack.c.l.b16 %v1090
    %v1166 = vunpack.c.h.b16 %v1090
    %v1167 = vunpack.c.l.b16 %v1091
    %v1168 = vunpack.c.h.b16 %v1091
    %v1169 = vunpack.c.l.b16 %v1092
    %v1170 = vunpack.c.h.b16 %v1092
    %v1171 = vunpack.c.l.b16 %v1093
    %v1172 = vunpack.c.h.b16 %v1093
    %v1173 = vunpack.c.l.b16 %v1094
    %v1174 = vunpack.c.h.b16 %v1094
    %v1175 = vunpack.c.l.b16 %v1095
    %v1176 = vunpack.c.h.b16 %v1095
    %v1177 = vunpack.c.l.b16 %v1096
    %v1178 = vunpack.c.h.b16 %v1096
    %v1179 = vunpack.c.l.b16 %v1097
    %v1180 = vunpack.c.h.b16 %v1097
    %v1181 = vunpack.c.l.b16 %v1098
    %v1182 = vunpack.c.h.b16 %v1098
    %v1183 = vunpack.c.l.b16 %v1099
    %v1184 = vunpack.c.h.b16 %v1099
    %v1185 = vunpack.c.l.b16 %v1100
    %v1186 = vunpack.c.h.b16 %v1100
    %v1187 = vunpack.c.l.b16 %v1101
    %v1188 = vunpack.c.h.b16 %v1101
    %v1189 = vunpack.c.l.b16 %v1102
    %v1190 = vunpack.c.h.b16 %v1102
    %v1191 = vunpack.c.l.b16 %v1103
    %v1192 = vunpack.c.h.b16 %v1103
    %v1193 = vunpack.c.l.b16 %v1104
    %v1194 = vunpack.c.h.b16 %v1104
    %v1195 = vunpack.c.l.b16 %v1105
    %v1196 = vunpack.c.h.b16 %v1105
    %v1197 = vunpack.c.l.b16 %v1106
    %v1198 = vunpack.c.h.b16 %v1106
    %v1199 = vunpack.c.l.b16 %v1107
    %v1200 = vunpack.c.h.b16 %v1107
    %v1201 = vunpack.c.l.b16 %v1108
    %v1202 = vunpack.c.h.b16 %v1108
    %v1203 = vunpack.c.l.b16 %v1109
    %v1204 = vunpack.c.h.b16 %v1109
    %v1205 = vunpack.c.l.b16 %v1110
    %v1206 = vunpack.c.h.b16 %v1110
    %v1207 = vpack.c.b16 %v1145, %v1143
    %v1208 = vpack.c.b16 %v1146, %v1144
    %v1209 = vpack.c.b16 %v1149, %v1147
    %v1210 = vpack.c.b16 %v1150, %v1148
    %v1211 = vpack.c.b16 %v1153, %v1151
    %v1212 = vpack.c.b16 %v1154, %v1152
    %v1213 = vpack.c.b16 %v1157, %v1155
    %v1214 = vpack.c.b16 %v1158, %v1156
    %v1215 = vpack.c.b16 %v1161, %v1159
    %v1216 = vpack.c.b16 %v1162, %v1160
    %v1217 = vpack.c.b16 %v1165, %v1163
    %v1218 = vpack.c.b16 %v1166, %v1164
    %v1219 = vpack.c.b16 %v1169, %v1167
    %v1220 = vpack.c.b16 %v1170, %v1168
    %v1221 = vpack.c.b16 %v1173, %v1171
    %v1222 = vpack.c.b16 %v1174, %v1172
    %v1223 = vpack.c.b16 %v1177, %v1175
    %v1224 = vpack.c.b16 %v1178, %v1176
    %v1225 = vpack.c.b16 %v1181, %v1179
    %v1226 = vpack.c.b16 %v1182, %v1180
    %v1227 = vpack.c.b16 %v1185, %v1183
    %v1228 = vpack.c.b16 %v1186, %v1184
    %v1229 = vpack.c.b16 %v1189, %v1187
    %v1230 = vpack.c.b16 %v1190, %v1188
    %v1231 = vpack.c.b16 %v1193, %v1191
    %v1232 = vpack.c.b16 %v1194, %v1192
    %v1233 = vpack.c.b16 %v1197, %v1195
    %v1234 = vpack.c.b16 %v1198, %v1196
    %v1235 = vpack.c.b16 %v1201, %v1199
    %v1236 = vpack.c.b16 %v1202, %v1200
    %v1237 = vpack.c.b16 %v1205, %v1203
    %v1238 = vpack.c.b16 %v1206, %v1204
    %1271 = vmatprep.subr.bf16.mxu0 %v1222
    %1272 = vmatpush1.bf16.msra.mxu0 %v1221
    %1273 = vmatprep.subr.bf16.mxu0 %v1220
    %1274 = vmatpush1.bf16.msra.mxu0 %v1219
    %1275 = vmatprep.subr.bf16.mxu0 %v1218
    %1276 = vmatpush1.bf16.msra.mxu0 %v1217
    %1277 = vmatprep.subr.bf16.mxu0 %v1216
    %1278 = vmatpush1.bf16.msra.mxu0 %v1215
    %1279 = vmatprep.subr.bf16.mxu0 %v1214
    %1280 = vmatpush1.bf16.msra.mxu0 %v1213
    %1281 = vmatprep.subr.bf16.mxu0 %v1212
    %1282 = vmatpush1.bf16.msra.mxu0 %v1211
    %1283 = vmatprep.subr.bf16.mxu0 %v1210
    %1284 = vmatpush1.bf16.msra.mxu0 %v1209
    %1285 = vmatprep.subr.bf16.mxu0 %v1208
    %1286 = vmatpush1.bf16.msra.mxu0 %v1207
    %1287 = vmatprep.subr.bf16.mxu0 %v1238
    %1288 = vmatpush2.bf16.msra.mxu0 %v1237
    %1289 = vmatprep.subr.bf16.mxu0 %v1236
    %1290 = vmatpush2.bf16.msra.mxu0 %v1235
    %1291 = vmatprep.subr.bf16.mxu0 %v1234
    %1292 = vmatpush2.bf16.msra.mxu0 %v1233
    %1293 = vmatprep.subr.bf16.mxu0 %v1232
    %1294 = vmatpush2.bf16.msra.mxu0 %v1231
    %1295 = vmatprep.subr.bf16.mxu0 %v1230
    %1296 = vmatpush2.bf16.msra.mxu0 %v1229
    %1297 = vmatprep.subr.bf16.mxu0 %v1228
    %1298 = vmatpush2.bf16.msra.mxu0 %v1227
    %1299 = vmatprep.subr.bf16.mxu0 %v1226
    %1300 = vmatpush2.bf16.msra.mxu0 %v1225
    %1301 = vmatprep.subr.bf16.mxu0 %v1224
    %1302 = vmatpush2.bf16.msra.mxu0 %v1223
    %1303 = vmatprep.mubr.bf16.mxu0 %v1064
    %1304 = vmatmul.mubr.bf16.gmra.mxu0 %v1063
    %v1305 = vpop.f32.mrf.mxu0
    %v1306 = vadd.f32 0.0, %v1305
    %v1307 = vpop.f32.mrf.mxu0
    %v1308 = vadd.f32 0.0, %v1307
    %v1309 = vpop.f32.mrf.mxu0
    %v1310 = vadd.f32 0.0, %v1309
    %v1311 = vpop.f32.mrf.mxu0
    %v1312 = vadd.f32 0.0, %v1311
    %1313 = vmatprep.mubr.bf16.mxu0 %v1066
    %1314 = vmatmul.mubr.bf16.gmra.mxu0 %v1065
    %v1315 = vpop.f32.mrf.mxu0
    %v1316 = vadd.f32 0.0, %v1315
    %v1317 = vpop.f32.mrf.mxu0
    %v1318 = vadd.f32 0.0, %v1317
    %v1319 = vpop.f32.mrf.mxu0
    %v1320 = vadd.f32 0.0, %v1319
    %v1321 = vpop.f32.mrf.mxu0
    %v1322 = vadd.f32 0.0, %v1321
    %1323 = vmatprep.mubr.bf16.mxu0 %v1068
    %1324 = vmatmul.mubr.bf16.gmra.mxu0 %v1067
    %v1325 = vpop.f32.mrf.mxu0
    %v1326 = vadd.f32 0.0, %v1325
    %v1327 = vpop.f32.mrf.mxu0
    %v1328 = vadd.f32 0.0, %v1327
    %v1329 = vpop.f32.mrf.mxu0
    %v1330 = vadd.f32 0.0, %v1329
    %v1331 = vpop.f32.mrf.mxu0
    %v1332 = vadd.f32 0.0, %v1331
    %1333 = vmatprep.mubr.bf16.mxu0 %v1070
    %1334 = vmatmul.mubr.bf16.gmra.mxu0 %v1069
    %v1335 = vpop.f32.mrf.mxu0
    %v1336 = vadd.f32 0.0, %v1335
    %v1337 = vpop.f32.mrf.mxu0
    %v1338 = vadd.f32 0.0, %v1337
    %v1339 = vpop.f32.mrf.mxu0
    %v1340 = vadd.f32 0.0, %v1339
    %v1341 = vpop.f32.mrf.mxu0
    %v1342 = vadd.f32 0.0, %v1341
    %1343 = vmatprep.mubr.bf16.mxu0 %v1072
    %1344 = vmatmul.mubr.bf16.gmra.mxu0 %v1071
    %v1345 = vpop.f32.mrf.mxu0
    %v1346 = vadd.f32 0.0, %v1345
    %v1347 = vpop.f32.mrf.mxu0
    %v1348 = vadd.f32 0.0, %v1347
    %v1349 = vpop.f32.mrf.mxu0
    %v1350 = vadd.f32 0.0, %v1349
    %v1351 = vpop.f32.mrf.mxu0
    %v1352 = vadd.f32 0.0, %v1351
    %1353 = vmatprep.mubr.bf16.mxu0 %v1074
    %1354 = vmatmul.mubr.bf16.gmra.mxu0 %v1073
    %v1355 = vpop.f32.mrf.mxu0
    %v1356 = vadd.f32 0.0, %v1355
    %v1357 = vpop.f32.mrf.mxu0
    %v1358 = vadd.f32 0.0, %v1357
    %v1359 = vpop.f32.mrf.mxu0
    %v1360 = vadd.f32 0.0, %v1359
    %v1361 = vpop.f32.mrf.mxu0
    %v1362 = vadd.f32 0.0, %v1361
    %1363 = vmatprep.mubr.bf16.mxu0 %v1076
    %1364 = vmatmul.mubr.bf16.gmra.mxu0 %v1075
    %v1365 = vpop.f32.mrf.mxu0
    %v1366 = vadd.f32 0.0, %v1365
    %v1367 = vpop.f32.mrf.mxu0
    %v1368 = vadd.f32 0.0, %v1367
    %v1369 = vpop.f32.mrf.mxu0
    %v1370 = vadd.f32 0.0, %v1369
    %v1371 = vpop.f32.mrf.mxu0
    %v1372 = vadd.f32 0.0, %v1371
    %1373 = vmatprep.mubr.bf16.mxu0 %v1078
    %1374 = vmatmul.mubr.bf16.gmra.mxu0 %v1077
    %v1375 = vpop.f32.mrf.mxu0
    %v1376 = vadd.f32 0.0, %v1375
    %v1377 = vpop.f32.mrf.mxu0
    %v1378 = vadd.f32 0.0, %v1377
    %v1379 = vpop.f32.mrf.mxu0
    %v1380 = vadd.f32 0.0, %v1379
    %v1381 = vpop.f32.mrf.mxu0
    %v1382 = vadd.f32 0.0, %v1381
    %1383 = vdwg.mxu0
    %v1384 = vld [vmem:[%s5] sm:$0x3]
    %v1385 = vld [vmem:[%s6] sm:$0x3]
    %v1386 = vadd.f32 %v1306, %v1310
    %v1387 = vadd.f32 %v1386, %v1316
    %v1388 = vadd.f32 %v1387, %v1320
    %v1389 = vadd.f32 %v1388, %v1326
    %v1390 = vadd.f32 %v1389, %v1330
    %v1391 = vadd.f32 %v1390, %v1336
    %v1392 = vadd.f32 %v1391, %v1340
    %v1393 = vadd.f32 %v1392, %v1346
    %v1394 = vadd.f32 %v1393, %v1350
    %v1395 = vadd.f32 %v1394, %v1356
    %v1396 = vadd.f32 %v1395, %v1360
    %v1397 = vadd.f32 %v1396, %v1366
    %v1398 = vadd.f32 %v1397, %v1370
    %v1399 = vadd.f32 %v1398, %v1376
    %v1400 = vadd.f32 %v1399, %v1380
    %v1401 = vrot.slane %v1400, 4
    %v1402 = vadd.f32 %v1400, %v1401
    %v1403 = vrot.slane %v1402, 2
    %v1404 = vadd.f32 %v1402, %v1403
    %v1405 = vrot.slane %v1404, 1
    %v1406 = vadd.f32 %v1404, %v1405
    %v1407 = vadd.f32 %v1308, %v1312
    %v1408 = vadd.f32 %v1407, %v1318
    %v1409 = vadd.f32 %v1408, %v1322
    %v1410 = vadd.f32 %v1409, %v1328
    %v1411 = vadd.f32 %v1410, %v1332
    %v1412 = vadd.f32 %v1411, %v1338
    %v1413 = vadd.f32 %v1412, %v1342
    %v1414 = vadd.f32 %v1413, %v1348
    %v1415 = vadd.f32 %v1414, %v1352
    %v1416 = vadd.f32 %v1415, %v1358
    %v1417 = vadd.f32 %v1416, %v1362
    %v1418 = vadd.f32 %v1417, %v1368
    %v1419 = vadd.f32 %v1418, %v1372
    %v1420 = vadd.f32 %v1419, %v1378
    %v1421 = vadd.f32 %v1420, %v1382
    %v1422 = vrot.slane %v1421, 4
    %v1423 = vadd.f32 %v1421, %v1422
    %v1424 = vrot.slane %v1423, 2
    %v1425 = vadd.f32 %v1423, %v1424
    %v1426 = vrot.slane %v1425, 1
    %v1427 = vadd.f32 %v1425, %v1426
    %v1428 = vmul.f32 %v1406, %v366
    %v1429 = vmul.f32 %v1427, %v366
    %v1430 = vmul.f32 %v1306, %v1306
    %v1431 = vmul.f32 %v1308, %v1308
    %v1432 = vmul.f32 %v1310, %v1310
    %v1433 = vmul.f32 %v1312, %v1312
    %v1434 = vmul.f32 %v1316, %v1316
    %v1435 = vmul.f32 %v1318, %v1318
    %v1436 = vmul.f32 %v1320, %v1320
    %v1437 = vmul.f32 %v1322, %v1322
    %v1438 = vmul.f32 %v1326, %v1326
    %v1439 = vmul.f32 %v1328, %v1328
    %v1440 = vmul.f32 %v1330, %v1330
    %v1441 = vmul.f32 %v1332, %v1332
    %v1442 = vmul.f32 %v1336, %v1336
    %v1443 = vmul.f32 %v1338, %v1338
    %v1444 = vmul.f32 %v1340, %v1340
    %v1445 = vmul.f32 %v1342, %v1342
    %v1446 = vmul.f32 %v1346, %v1346
    %v1447 = vmul.f32 %v1348, %v1348
    %v1448 = vmul.f32 %v1350, %v1350
    %v1449 = vmul.f32 %v1352, %v1352
    %v1450 = vmul.f32 %v1356, %v1356
    %v1451 = vmul.f32 %v1358, %v1358
    %v1452 = vmul.f32 %v1360, %v1360
    %v1453 = vmul.f32 %v1362, %v1362
    %v1454 = vmul.f32 %v1366, %v1366
    %v1455 = vmul.f32 %v1368, %v1368
    %v1456 = vmul.f32 %v1370, %v1370
    %v1457 = vmul.f32 %v1372, %v1372
    %v1458 = vmul.f32 %v1376, %v1376
    %v1459 = vmul.f32 %v1378, %v1378
    %v1460 = vmul.f32 %v1380, %v1380
    %v1461 = vmul.f32 %v1382, %v1382
    %v1462 = vadd.f32 %v1430, %v1432
    %v1463 = vadd.f32 %v1462, %v1434
    %v1464 = vadd.f32 %v1463, %v1436
    %v1465 = vadd.f32 %v1464, %v1438
    %v1466 = vadd.f32 %v1465, %v1440
    %v1467 = vadd.f32 %v1466, %v1442
    %v1468 = vadd.f32 %v1467, %v1444
    %v1469 = vadd.f32 %v1468, %v1446
    %v1470 = vadd.f32 %v1469, %v1448
    %v1471 = vadd.f32 %v1470, %v1450
    %v1472 = vadd.f32 %v1471, %v1452
    %v1473 = vadd.f32 %v1472, %v1454
    %v1474 = vadd.f32 %v1473, %v1456
    %v1475 = vadd.f32 %v1474, %v1458
    %v1476 = vadd.f32 %v1475, %v1460
    %v1477 = vrot.slane %v1476, 4
    %v1478 = vadd.f32 %v1476, %v1477
    %v1479 = vrot.slane %v1478, 2
    %v1480 = vadd.f32 %v1478, %v1479
    %v1481 = vrot.slane %v1480, 1
    %v1482 = vadd.f32 %v1480, %v1481
    %v1483 = vadd.f32 %v1431, %v1433
    %v1484 = vadd.f32 %v1483, %v1435
    %v1485 = vadd.f32 %v1484, %v1437
    %v1486 = vadd.f32 %v1485, %v1439
    %v1487 = vadd.f32 %v1486, %v1441
    %v1488 = vadd.f32 %v1487, %v1443
    %v1489 = vadd.f32 %v1488, %v1445
    %v1490 = vadd.f32 %v1489, %v1447
    %v1491 = vadd.f32 %v1490, %v1449
    %v1492 = vadd.f32 %v1491, %v1451
    %v1493 = vadd.f32 %v1492, %v1453
    %v1494 = vadd.f32 %v1493, %v1455
    %v1495 = vadd.f32 %v1494, %v1457
    %v1496 = vadd.f32 %v1495, %v1459
    %v1497 = vadd.f32 %v1496, %v1461
    %v1498 = vrot.slane %v1497, 4
    %v1499 = vadd.f32 %v1497, %v1498
    %v1500 = vrot.slane %v1499, 2
    %v1501 = vadd.f32 %v1499, %v1500
    %v1502 = vrot.slane %v1501, 1
    %v1503 = vadd.f32 %v1501, %v1502
    %v1504 = vmul.f32 %v1482, %v366
    %v1505 = vmul.f32 %v1503, %v366
    %v1506 = vmul.f32 %v1428, %v1428
    %v1507 = vmul.f32 %v1429, %v1429
    %v1508 = vsub.f32 %v1504, %v1506
    %v1509 = vsub.f32 %v1505, %v1507
    %v1510 = vadd.f32 %v1508, 1e-05
    %v1511 = vadd.f32 %v1509, 1e-05
    %v1512 = vrsqrt.pop %v1510
    %v1513 = vrsqrt.pop %v1511
    %v1516 = vcombine.low %v1512, %v1513
    %v1518 = vunpack.c.l.s4 1966171168
    %v1519 = vunpack.c.0.s8 %v1518
    %v1520 = vlaneseq
    %v1521 = vshrl.u32 %v1520, 7
    %v1522 = vsub.s32 %v1519, %v1521
    %v1523 = vrot.slane %v1516, %v1522
    %v1525 = vunpack.c.l.s4 1966171168
    %v1526 = vunpack.c.0.s8 %v1525
    %v1527 = vlaneseq
    %v1528 = vshrl.u32 %v1527, 7
    %v1529 = vsub.s32 %v1526, %v1528
    %v1530 = vrot.slane %v1523, %v1529
    %v1532 = vmul.f32 %v1384, %v1530
    %v1534 = vlaneseq
    %v1535 = vshrl.u32 %v1534, 7
    %v1536 = vsub.s32 0, %v1535
    %v1537 = vrot.slane %v1532, %v1536
    %v1538 = vlaneseq
    %v1539 = vshrl.u32 %v1538, 7
    %v1540 = vsub.s32 1, %v1539
    %v1541 = vrot.slane %v1532, %v1540
    %v1544 = vmul.f32 %v1428, %v1537
    %v1545 = vmul.f32 %v1429, %v1541
    %v1548 = vcombine.low %v1544, %v1545
    %v1550 = vunpack.c.l.s4 1966171168
    %v1551 = vunpack.c.0.s8 %v1550
    %v1552 = vlaneseq
    %v1553 = vshrl.u32 %v1552, 7
    %v1554 = vsub.s32 %v1551, %v1553
    %v1555 = vrot.slane %v1548, %v1554
    %v1557 = vunpack.c.l.s4 1966171168
    %v1558 = vunpack.c.0.s8 %v1557
    %v1559 = vlaneseq
    %v1560 = vshrl.u32 %v1559, 7
    %v1561 = vsub.s32 %v1558, %v1560
    %v1562 = vrot.slane %v1555, %v1561
    %v1564 = vsub.f32 %v1385, %v1562
    %v1565 = vmul.f32 %v1306, %v1537
    %v1566 = vmul.f32 %v1308, %v1541
    %v1567 = vmul.f32 %v1310, %v1537
    %v1568 = vmul.f32 %v1312, %v1541
    %v1569 = vmul.f32 %v1316, %v1537
    %v1570 = vmul.f32 %v1318, %v1541
    %v1571 = vmul.f32 %v1320, %v1537
    %v1572 = vmul.f32 %v1322, %v1541
    %v1573 = vmul.f32 %v1326, %v1537
    %v1574 = vmul.f32 %v1328, %v1541
    %v1575 = vmul.f32 %v1330, %v1537
    %v1576 = vmul.f32 %v1332, %v1541
    %v1577 = vmul.f32 %v1336, %v1537
    %v1578 = vmul.f32 %v1338, %v1541
    %v1579 = vmul.f32 %v1340, %v1537
    %v1580 = vmul.f32 %v1342, %v1541
    %v1581 = vmul.f32 %v1346, %v1537
    %v1582 = vmul.f32 %v1348, %v1541
    %v1583 = vmul.f32 %v1350, %v1537
    %v1584 = vmul.f32 %v1352, %v1541
    %v1585 = vmul.f32 %v1356, %v1537
    %v1586 = vmul.f32 %v1358, %v1541
    %v1587 = vmul.f32 %v1360, %v1537
    %v1588 = vmul.f32 %v1362, %v1541
    %v1589 = vmul.f32 %v1366, %v1537
    %v1590 = vmul.f32 %v1368, %v1541
    %v1591 = vmul.f32 %v1370, %v1537
    %v1592 = vmul.f32 %v1372, %v1541
    %v1593 = vmul.f32 %v1376, %v1537
    %v1594 = vmul.f32 %v1378, %v1541
    %v1595 = vmul.f32 %v1380, %v1537
    %v1596 = vmul.f32 %v1382, %v1541
    %v1598 = vlaneseq
    %v1599 = vshrl.u32 %v1598, 7
    %v1600 = vsub.s32 0, %v1599
    %v1601 = vrot.slane %v1564, %v1600
    %v1602 = vlaneseq
    %v1603 = vshrl.u32 %v1602, 7
    %v1604 = vsub.s32 1, %v1603
    %v1605 = vrot.slane %v1564, %v1604
    %v1608 = vadd.f32 %v1565, %v1601
    %v1609 = vadd.f32 %v1566, %v1605
    %v1610 = vadd.f32 %v1567, %v1601
    %v1611 = vadd.f32 %v1568, %v1605
    %v1612 = vadd.f32 %v1569, %v1601
    %v1613 = vadd.f32 %v1570, %v1605
    %v1614 = vadd.f32 %v1571, %v1601
    %v1615 = vadd.f32 %v1572, %v1605
    %v1616 = vadd.f32 %v1573, %v1601
    %v1617 = vadd.f32 %v1574, %v1605
    %v1618 = vadd.f32 %v1575, %v1601
    %v1619 = vadd.f32 %v1576, %v1605
    %v1620 = vadd.f32 %v1577, %v1601
    %v1621 = vadd.f32 %v1578, %v1605
    %v1622 = vadd.f32 %v1579, %v1601
    %v1623 = vadd.f32 %v1580, %v1605
    %v1624 = vadd.f32 %v1581, %v1601
    %v1625 = vadd.f32 %v1582, %v1605
    %v1626 = vadd.f32 %v1583, %v1601
    %v1627 = vadd.f32 %v1584, %v1605
    %v1628 = vadd.f32 %v1585, %v1601
    %v1629 = vadd.f32 %v1586, %v1605
    %v1630 = vadd.f32 %v1587, %v1601
    %v1631 = vadd.f32 %v1588, %v1605
    %v1632 = vadd.f32 %v1589, %v1601
    %v1633 = vadd.f32 %v1590, %v1605
    %v1634 = vadd.f32 %v1591, %v1601
    %v1635 = vadd.f32 %v1592, %v1605
    %v1636 = vadd.f32 %v1593, %v1601
    %v1637 = vadd.f32 %v1594, %v1605
    %v1638 = vadd.f32 %v1595, %v1601
    %v1639 = vadd.f32 %v1596, %v1605
    %v1640 = vmax.f32 %v1608, 0.0
    %v1641 = vmax.f32 %v1609, 0.0
    %v1642 = vmax.f32 %v1610, 0.0
    %v1643 = vmax.f32 %v1611, 0.0
    %v1644 = vmax.f32 %v1612, 0.0
    %v1645 = vmax.f32 %v1613, 0.0
    %v1646 = vmax.f32 %v1614, 0.0
    %v1647 = vmax.f32 %v1615, 0.0
    %v1648 = vmax.f32 %v1616, 0.0
    %v1649 = vmax.f32 %v1617, 0.0
    %v1650 = vmax.f32 %v1618, 0.0
    %v1651 = vmax.f32 %v1619, 0.0
    %v1652 = vmax.f32 %v1620, 0.0
    %v1653 = vmax.f32 %v1621, 0.0
    %v1654 = vmax.f32 %v1622, 0.0
    %v1655 = vmax.f32 %v1623, 0.0
    %v1656 = vmax.f32 %v1624, 0.0
    %v1657 = vmax.f32 %v1625, 0.0
    %v1658 = vmax.f32 %v1626, 0.0
    %v1659 = vmax.f32 %v1627, 0.0
    %v1660 = vmax.f32 %v1628, 0.0
    %v1661 = vmax.f32 %v1629, 0.0
    %v1662 = vmax.f32 %v1630, 0.0
    %v1663 = vmax.f32 %v1631, 0.0
    %v1664 = vmax.f32 %v1632, 0.0
    %v1665 = vmax.f32 %v1633, 0.0
    %v1666 = vmax.f32 %v1634, 0.0
    %v1667 = vmax.f32 %v1635, 0.0
    %v1668 = vmax.f32 %v1636, 0.0
    %v1669 = vmax.f32 %v1637, 0.0
    %v1670 = vmax.f32 %v1638, 0.0
    %v1671 = vmax.f32 %v1639, 0.0
    %v1672 = vxor.u32 %v647, 2242054355
    %v1673 = vxor.u32 %v648, 2242054355
    %v1674 = vxor.u32 %v649, 2242054355
    %v1675 = vxor.u32 %v650, 2242054355
    %v1676 = vxor.u32 %v651, 2242054355
    %v1677 = vxor.u32 %v652, 2242054355
    %v1678 = vxor.u32 %v653, 2242054355
    %v1679 = vxor.u32 %v654, 2242054355
    %v1680 = vxor.u32 %v655, 2242054355
    %v1681 = vxor.u32 %v656, 2242054355
    %v1682 = vxor.u32 %v657, 2242054355
    %v1683 = vxor.u32 %v658, 2242054355
    %v1684 = vxor.u32 %v659, 2242054355
    %v1685 = vxor.u32 %v660, 2242054355
    %v1686 = vxor.u32 %v661, 2242054355
    %v1687 = vxor.u32 %v662, 2242054355
    %v1688 = vxor.u32 %v663, 2242054355
    %v1689 = vxor.u32 %v664, 2242054355
    %v1690 = vxor.u32 %v665, 2242054355
    %v1691 = vxor.u32 %v666, 2242054355
    %v1692 = vxor.u32 %v667, 2242054355
    %v1693 = vxor.u32 %v668, 2242054355
    %v1694 = vxor.u32 %v669, 2242054355
    %v1695 = vxor.u32 %v670, 2242054355
    %v1696 = vxor.u32 %v671, 2242054355
    %v1697 = vxor.u32 %v672, 2242054355
    %v1698 = vxor.u32 %v673, 2242054355
    %v1699 = vxor.u32 %v674, 2242054355
    %v1700 = vxor.u32 %v675, 2242054355
    %v1701 = vxor.u32 %v676, 2242054355
    %v1702 = vxor.u32 %v677, 2242054355
    %v1703 = vxor.u32 %v678, 2242054355
    %v1704 = vshrl.u32 %v1672, 16
    %v1705 = vshrl.u32 %v1673, 16
    %v1706 = vshrl.u32 %v1674, 16
    %v1707 = vshrl.u32 %v1675, 16
    %v1708 = vshrl.u32 %v1676, 16
    %v1709 = vshrl.u32 %v1677, 16
    %v1710 = vshrl.u32 %v1678, 16
    %v1711 = vshrl.u32 %v1679, 16
    %v1712 = vshrl.u32 %v1680, 16
    %v1713 = vshrl.u32 %v1681, 16
    %v1714 = vshrl.u32 %v1682, 16
    %v1715 = vshrl.u32 %v1683, 16
    %v1716 = vshrl.u32 %v1684, 16
    %v1717 = vshrl.u32 %v1685, 16
    %v1718 = vshrl.u32 %v1686, 16
    %v1719 = vshrl.u32 %v1687, 16
    %v1720 = vshrl.u32 %v1688, 16
    %v1721 = vshrl.u32 %v1689, 16
    %v1722 = vshrl.u32 %v1690, 16
    %v1723 = vshrl.u32 %v1691, 16
    %v1724 = vshrl.u32 %v1692, 16
    %v1725 = vshrl.u32 %v1693, 16
    %v1726 = vshrl.u32 %v1694, 16
    %v1727 = vshrl.u32 %v1695, 16
    %v1728 = vshrl.u32 %v1696, 16
    %v1729 = vshrl.u32 %v1697, 16
    %v1730 = vshrl.u32 %v1698, 16
    %v1731 = vshrl.u32 %v1699, 16
    %v1732 = vshrl.u32 %v1700, 16
    %v1733 = vshrl.u32 %v1701, 16
    %v1734 = vshrl.u32 %v1702, 16
    %v1735 = vshrl.u32 %v1703, 16
    %v1736 = vxor.u32 %v1672, %v1704
    %v1737 = vxor.u32 %v1673, %v1705
    %v1738 = vxor.u32 %v1674, %v1706
    %v1739 = vxor.u32 %v1675, %v1707
    %v1740 = vxor.u32 %v1676, %v1708
    %v1741 = vxor.u32 %v1677, %v1709
    %v1742 = vxor.u32 %v1678, %v1710
    %v1743 = vxor.u32 %v1679, %v1711
    %v1744 = vxor.u32 %v1680, %v1712
    %v1745 = vxor.u32 %v1681, %v1713
    %v1746 = vxor.u32 %v1682, %v1714
    %v1747 = vxor.u32 %v1683, %v1715
    %v1748 = vxor.u32 %v1684, %v1716
    %v1749 = vxor.u32 %v1685, %v1717
    %v1750 = vxor.u32 %v1686, %v1718
    %v1751 = vxor.u32 %v1687, %v1719
    %v1752 = vxor.u32 %v1688, %v1720
    %v1753 = vxor.u32 %v1689, %v1721
    %v1754 = vxor.u32 %v1690, %v1722
    %v1755 = vxor.u32 %v1691, %v1723
    %v1756 = vxor.u32 %v1692, %v1724
    %v1757 = vxor.u32 %v1693, %v1725
    %v1758 = vxor.u32 %v1694, %v1726
    %v1759 = vxor.u32 %v1695, %v1727
    %v1760 = vxor.u32 %v1696, %v1728
    %v1761 = vxor.u32 %v1697, %v1729
    %v1762 = vxor.u32 %v1698, %v1730
    %v1763 = vxor.u32 %v1699, %v1731
    %v1764 = vxor.u32 %v1700, %v1732
    %v1765 = vxor.u32 %v1701, %v1733
    %v1766 = vxor.u32 %v1702, %v1734
    %v1767 = vxor.u32 %v1703, %v1735
    %v1768 = vmul.u32 %v1736, 2146121005
    %v1769 = vmul.u32 %v1737, 2146121005
    %v1770 = vmul.u32 %v1738, 2146121005
    %v1771 = vmul.u32 %v1739, 2146121005
    %v1772 = vmul.u32 %v1740, 2146121005
    %v1773 = vmul.u32 %v1741, 2146121005
    %v1774 = vmul.u32 %v1742, 2146121005
    %v1775 = vmul.u32 %v1743, 2146121005
    %v1776 = vmul.u32 %v1744, 2146121005
    %v1777 = vmul.u32 %v1745, 2146121005
    %v1778 = vmul.u32 %v1746, 2146121005
    %v1779 = vmul.u32 %v1747, 2146121005
    %v1780 = vmul.u32 %v1748, 2146121005
    %v1781 = vmul.u32 %v1749, 2146121005
    %v1782 = vmul.u32 %v1750, 2146121005
    %v1783 = vmul.u32 %v1751, 2146121005
    %v1784 = vmul.u32 %v1752, 2146121005
    %v1785 = vmul.u32 %v1753, 2146121005
    %v1786 = vmul.u32 %v1754, 2146121005
    %v1787 = vmul.u32 %v1755, 2146121005
    %v1788 = vmul.u32 %v1756, 2146121005
    %v1789 = vmul.u32 %v1757, 2146121005
    %v1790 = vmul.u32 %v1758, 2146121005
    %v1791 = vmul.u32 %v1759, 2146121005
    %v1792 = vmul.u32 %v1760, 2146121005
    %v1793 = vmul.u32 %v1761, 2146121005
    %v1794 = vmul.u32 %v1762, 2146121005
    %v1795 = vmul.u32 %v1763, 2146121005
    %v1796 = vmul.u32 %v1764, 2146121005
    %v1797 = vmul.u32 %v1765, 2146121005
    %v1798 = vmul.u32 %v1766, 2146121005
    %v1799 = vmul.u32 %v1767, 2146121005
    %v1800 = vshrl.u32 %v1768, 15
    %v1801 = vshrl.u32 %v1769, 15
    %v1802 = vshrl.u32 %v1770, 15
    %v1803 = vshrl.u32 %v1771, 15
    %v1804 = vshrl.u32 %v1772, 15
    %v1805 = vshrl.u32 %v1773, 15
    %v1806 = vshrl.u32 %v1774, 15
    %v1807 = vshrl.u32 %v1775, 15
    %v1808 = vshrl.u32 %v1776, 15
    %v1809 = vshrl.u32 %v1777, 15
    %v1810 = vshrl.u32 %v1778, 15
    %v1811 = vshrl.u32 %v1779, 15
    %v1812 = vshrl.u32 %v1780, 15
    %v1813 = vshrl.u32 %v1781, 15
    %v1814 = vshrl.u32 %v1782, 15
    %v1815 = vshrl.u32 %v1783, 15
    %v1816 = vshrl.u32 %v1784, 15
    %v1817 = vshrl.u32 %v1785, 15
    %v1818 = vshrl.u32 %v1786, 15
    %v1819 = vshrl.u32 %v1787, 15
    %v1820 = vshrl.u32 %v1788, 15
    %v1821 = vshrl.u32 %v1789, 15
    %v1822 = vshrl.u32 %v1790, 15
    %v1823 = vshrl.u32 %v1791, 15
    %v1824 = vshrl.u32 %v1792, 15
    %v1825 = vshrl.u32 %v1793, 15
    %v1826 = vshrl.u32 %v1794, 15
    %v1827 = vshrl.u32 %v1795, 15
    %v1828 = vshrl.u32 %v1796, 15
    %v1829 = vshrl.u32 %v1797, 15
    %v1830 = vshrl.u32 %v1798, 15
    %v1831 = vshrl.u32 %v1799, 15
    %v1832 = vxor.u32 %v1768, %v1800
    %v1833 = vxor.u32 %v1769, %v1801
    %v1834 = vxor.u32 %v1770, %v1802
    %v1835 = vxor.u32 %v1771, %v1803
    %v1836 = vxor.u32 %v1772, %v1804
    %v1837 = vxor.u32 %v1773, %v1805
    %v1838 = vxor.u32 %v1774, %v1806
    %v1839 = vxor.u32 %v1775, %v1807
    %v1840 = vxor.u32 %v1776, %v1808
    %v1841 = vxor.u32 %v1777, %v1809
    %v1842 = vxor.u32 %v1778, %v1810
    %v1843 = vxor.u32 %v1779, %v1811
    %v1844 = vxor.u32 %v1780, %v1812
    %v1845 = vxor.u32 %v1781, %v1813
    %v1846 = vxor.u32 %v1782, %v1814
    %v1847 = vxor.u32 %v1783, %v1815
    %v1848 = vxor.u32 %v1784, %v1816
    %v1849 = vxor.u32 %v1785, %v1817
    %v1850 = vxor.u32 %v1786, %v1818
    %v1851 = vxor.u32 %v1787, %v1819
    %v1852 = vxor.u32 %v1788, %v1820
    %v1853 = vxor.u32 %v1789, %v1821
    %v1854 = vxor.u32 %v1790, %v1822
    %v1855 = vxor.u32 %v1791, %v1823
    %v1856 = vxor.u32 %v1792, %v1824
    %v1857 = vxor.u32 %v1793, %v1825
    %v1858 = vxor.u32 %v1794, %v1826
    %v1859 = vxor.u32 %v1795, %v1827
    %v1860 = vxor.u32 %v1796, %v1828
    %v1861 = vxor.u32 %v1797, %v1829
    %v1862 = vxor.u32 %v1798, %v1830
    %v1863 = vxor.u32 %v1799, %v1831
    %v1864 = vmul.u32 %v1832, 2221713035
    %v1865 = vmul.u32 %v1833, 2221713035
    %v1866 = vmul.u32 %v1834, 2221713035
    %v1867 = vmul.u32 %v1835, 2221713035
    %v1868 = vmul.u32 %v1836, 2221713035
    %v1869 = vmul.u32 %v1837, 2221713035
    %v1870 = vmul.u32 %v1838, 2221713035
    %v1871 = vmul.u32 %v1839, 2221713035
    %v1872 = vmul.u32 %v1840, 2221713035
    %v1873 = vmul.u32 %v1841, 2221713035
    %v1874 = vmul.u32 %v1842, 2221713035
    %v1875 = vmul.u32 %v1843, 2221713035
    %v1876 = vmul.u32 %v1844, 2221713035
    %v1877 = vmul.u32 %v1845, 2221713035
    %v1878 = vmul.u32 %v1846, 2221713035
    %v1879 = vmul.u32 %v1847, 2221713035
    %v1880 = vmul.u32 %v1848, 2221713035
    %v1881 = vmul.u32 %v1849, 2221713035
    %v1882 = vmul.u32 %v1850, 2221713035
    %v1883 = vmul.u32 %v1851, 2221713035
    %v1884 = vmul.u32 %v1852, 2221713035
    %v1885 = vmul.u32 %v1853, 2221713035
    %v1886 = vmul.u32 %v1854, 2221713035
    %v1887 = vmul.u32 %v1855, 2221713035
    %v1888 = vmul.u32 %v1856, 2221713035
    %v1889 = vmul.u32 %v1857, 2221713035
    %v1890 = vmul.u32 %v1858, 2221713035
    %v1891 = vmul.u32 %v1859, 2221713035
    %v1892 = vmul.u32 %v1860, 2221713035
    %v1893 = vmul.u32 %v1861, 2221713035
    %v1894 = vmul.u32 %v1862, 2221713035
    %v1895 = vmul.u32 %v1863, 2221713035
    %v1896 = vshrl.u32 %v1864, 16
    %v1897 = vshrl.u32 %v1865, 16
    %v1898 = vshrl.u32 %v1866, 16
    %v1899 = vshrl.u32 %v1867, 16
    %v1900 = vshrl.u32 %v1868, 16
    %v1901 = vshrl.u32 %v1869, 16
    %v1902 = vshrl.u32 %v1870, 16
    %v1903 = vshrl.u32 %v1871, 16
    %v1904 = vshrl.u32 %v1872, 16
    %v1905 = vshrl.u32 %v1873, 16
    %v1906 = vshrl.u32 %v1874, 16
    %v1907 = vshrl.u32 %v1875, 16
    %v1908 = vshrl.u32 %v1876, 16
    %v1909 = vshrl.u32 %v1877, 16
    %v1910 = vshrl.u32 %v1878, 16
    %v1911 = vshrl.u32 %v1879, 16
    %v1912 = vshrl.u32 %v1880, 16
    %v1913 = vshrl.u32 %v1881, 16
    %v1914 = vshrl.u32 %v1882, 16
    %v1915 = vshrl.u32 %v1883, 16
    %v1916 = vshrl.u32 %v1884, 16
    %v1917 = vshrl.u32 %v1885, 16
    %v1918 = vshrl.u32 %v1886, 16
    %v1919 = vshrl.u32 %v1887, 16
    %v1920 = vshrl.u32 %v1888, 16
    %v1921 = vshrl.u32 %v1889, 16
    %v1922 = vshrl.u32 %v1890, 16
    %v1923 = vshrl.u32 %v1891, 16
    %v1924 = vshrl.u32 %v1892, 16
    %v1925 = vshrl.u32 %v1893, 16
    %v1926 = vshrl.u32 %v1894, 16
    %v1927 = vshrl.u32 %v1895, 16
    %v1928 = vxor.u32 %v1864, %v1896
    %v1929 = vxor.u32 %v1865, %v1897
    %v1930 = vxor.u32 %v1866, %v1898
    %v1931 = vxor.u32 %v1867, %v1899
    %v1932 = vxor.u32 %v1868, %v1900
    %v1933 = vxor.u32 %v1869, %v1901
    %v1934 = vxor.u32 %v1870, %v1902
    %v1935 = vxor.u32 %v1871, %v1903
    %v1936 = vxor.u32 %v1872, %v1904
    %v1937 = vxor.u32 %v1873, %v1905
    %v1938 = vxor.u32 %v1874, %v1906
    %v1939 = vxor.u32 %v1875, %v1907
    %v1940 = vxor.u32 %v1876, %v1908
    %v1941 = vxor.u32 %v1877, %v1909
    %v1942 = vxor.u32 %v1878, %v1910
    %v1943 = vxor.u32 %v1879, %v1911
    %v1944 = vxor.u32 %v1880, %v1912
    %v1945 = vxor.u32 %v1881, %v1913
    %v1946 = vxor.u32 %v1882, %v1914
    %v1947 = vxor.u32 %v1883, %v1915
    %v1948 = vxor.u32 %v1884, %v1916
    %v1949 = vxor.u32 %v1885, %v1917
    %v1950 = vxor.u32 %v1886, %v1918
    %v1951 = vxor.u32 %v1887, %v1919
    %v1952 = vxor.u32 %v1888, %v1920
    %v1953 = vxor.u32 %v1889, %v1921
    %v1954 = vxor.u32 %v1890, %v1922
    %v1955 = vxor.u32 %v1891, %v1923
    %v1956 = vxor.u32 %v1892, %v1924
    %v1957 = vxor.u32 %v1893, %v1925
    %v1958 = vxor.u32 %v1894, %v1926
    %v1959 = vxor.u32 %v1895, %v1927
    %v1960 = vshrl.u32 %v1928, 8
    %v1961 = vshrl.u32 %v1929, 8
    %v1962 = vshrl.u32 %v1930, 8
    %v1963 = vshrl.u32 %v1931, 8
    %v1964 = vshrl.u32 %v1932, 8
    %v1965 = vshrl.u32 %v1933, 8
    %v1966 = vshrl.u32 %v1934, 8
    %v1967 = vshrl.u32 %v1935, 8
    %v1968 = vshrl.u32 %v1936, 8
    %v1969 = vshrl.u32 %v1937, 8
    %v1970 = vshrl.u32 %v1938, 8
    %v1971 = vshrl.u32 %v1939, 8
    %v1972 = vshrl.u32 %v1940, 8
    %v1973 = vshrl.u32 %v1941, 8
    %v1974 = vshrl.u32 %v1942, 8
    %v1975 = vshrl.u32 %v1943, 8
    %v1976 = vshrl.u32 %v1944, 8
    %v1977 = vshrl.u32 %v1945, 8
    %v1978 = vshrl.u32 %v1946, 8
    %v1979 = vshrl.u32 %v1947, 8
    %v1980 = vshrl.u32 %v1948, 8
    %v1981 = vshrl.u32 %v1949, 8
    %v1982 = vshrl.u32 %v1950, 8
    %v1983 = vshrl.u32 %v1951, 8
    %v1984 = vshrl.u32 %v1952, 8
    %v1985 = vshrl.u32 %v1953, 8
    %v1986 = vshrl.u32 %v1954, 8
    %v1987 = vshrl.u32 %v1955, 8
    %v1988 = vshrl.u32 %v1956, 8
    %v1989 = vshrl.u32 %v1957, 8
    %v1990 = vshrl.u32 %v1958, 8
    %v1991 = vshrl.u32 %v1959, 8
    %vm1992 = vcmp.ge.s32.totalorder %v1960, 5033164
    %vm1993 = vcmp.ge.s32.totalorder %v1961, 5033164
    %vm1994 = vcmp.ge.s32.totalorder %v1962, 5033164
    %vm1995 = vcmp.ge.s32.totalorder %v1963, 5033164
    %vm1996 = vcmp.ge.s32.totalorder %v1964, 5033164
    %vm1997 = vcmp.ge.s32.totalorder %v1965, 5033164
    %vm1998 = vcmp.ge.s32.totalorder %v1966, 5033164
    %vm1999 = vcmp.ge.s32.totalorder %v1967, 5033164
    %vm2000 = vcmp.ge.s32.totalorder %v1968, 5033164
    %vm2001 = vcmp.ge.s32.totalorder %v1969, 5033164
    %vm2002 = vcmp.ge.s32.totalorder %v1970, 5033164
    %vm2003 = vcmp.ge.s32.totalorder %v1971, 5033164
    %vm2004 = vcmp.ge.s32.totalorder %v1972, 5033164
    %vm2005 = vcmp.ge.s32.totalorder %v1973, 5033164
    %vm2006 = vcmp.ge.s32.totalorder %v1974, 5033164
    %vm2007 = vcmp.ge.s32.totalorder %v1975, 5033164
    %vm2008 = vcmp.ge.s32.totalorder %v1976, 5033164
    %vm2009 = vcmp.ge.s32.totalorder %v1977, 5033164
    %vm2010 = vcmp.ge.s32.totalorder %v1978, 5033164
    %vm2011 = vcmp.ge.s32.totalorder %v1979, 5033164
    %vm2012 = vcmp.ge.s32.totalorder %v1980, 5033164
    %vm2013 = vcmp.ge.s32.totalorder %v1981, 5033164
    %vm2014 = vcmp.ge.s32.totalorder %v1982, 5033164
    %vm2015 = vcmp.ge.s32.totalorder %v1983, 5033164
    %vm2016 = vcmp.ge.s32.totalorder %v1984, 5033164
    %vm2017 = vcmp.ge.s32.totalorder %v1985, 5033164
    %vm2018 = vcmp.ge.s32.totalorder %v1986, 5033164
    %vm2019 = vcmp.ge.s32.totalorder %v1987, 5033164
    %vm2020 = vcmp.ge.s32.totalorder %v1988, 5033164
    %vm2021 = vcmp.ge.s32.totalorder %v1989, 5033164
    %vm2022 = vcmp.ge.s32.totalorder %v1990, 5033164
    %vm2023 = vcmp.ge.s32.totalorder %v1991, 5033164
    %v2024 = vsel %vm1992, %v1640, 0.0
    %v2025 = vsel %vm1993, %v1641, 0.0
    %v2026 = vsel %vm1994, %v1642, 0.0
    %v2027 = vsel %vm1995, %v1643, 0.0
    %v2028 = vsel %vm1996, %v1644, 0.0
    %v2029 = vsel %vm1997, %v1645, 0.0
    %v2030 = vsel %vm1998, %v1646, 0.0
    %v2031 = vsel %vm1999, %v1647, 0.0
    %v2032 = vsel %vm2000, %v1648, 0.0
    %v2033 = vsel %vm2001, %v1649, 0.0
    %v2034 = vsel %vm2002, %v1650, 0.0
    %v2035 = vsel %vm2003, %v1651, 0.0
    %v2036 = vsel %vm2004, %v1652, 0.0
    %v2037 = vsel %vm2005, %v1653, 0.0
    %v2038 = vsel %vm2006, %v1654, 0.0
    %v2039 = vsel %vm2007, %v1655, 0.0
    %v2040 = vsel %vm2008, %v1656, 0.0
    %v2041 = vsel %vm2009, %v1657, 0.0
    %v2042 = vsel %vm2010, %v1658, 0.0
    %v2043 = vsel %vm2011, %v1659, 0.0
    %v2044 = vsel %vm2012, %v1660, 0.0
    %v2045 = vsel %vm2013, %v1661, 0.0
    %v2046 = vsel %vm2014, %v1662, 0.0
    %v2047 = vsel %vm2015, %v1663, 0.0
    %v2048 = vsel %vm2016, %v1664, 0.0
    %v2049 = vsel %vm2017, %v1665, 0.0
    %v2050 = vsel %vm2018, %v1666, 0.0
    %v2051 = vsel %vm2019, %v1667, 0.0
    %v2052 = vsel %vm2020, %v1668, 0.0
    %v2053 = vsel %vm2021, %v1669, 0.0
    %v2054 = vsel %vm2022, %v1670, 0.0
    %v2055 = vsel %vm2023, %v1671, 0.0
    %v2056 = vpack.c.bf16 %v2026, %v2024
    %v2057 = vpack.c.bf16 %v2027, %v2025
    %v2058 = vpack.c.bf16 %v2030, %v2028
    %v2059 = vpack.c.bf16 %v2031, %v2029
    %v2060 = vpack.c.bf16 %v2034, %v2032
    %v2061 = vpack.c.bf16 %v2035, %v2033
    %v2062 = vpack.c.bf16 %v2038, %v2036
    %v2063 = vpack.c.bf16 %v2039, %v2037
    %v2064 = vpack.c.bf16 %v2042, %v2040
    %v2065 = vpack.c.bf16 %v2043, %v2041
    %v2066 = vpack.c.bf16 %v2046, %v2044
    %v2067 = vpack.c.bf16 %v2047, %v2045
    %v2068 = vpack.c.bf16 %v2050, %v2048
    %v2069 = vpack.c.bf16 %v2051, %v2049
    %v2070 = vpack.c.bf16 %v2054, %v2052
    %v2071 = vpack.c.bf16 %v2055, %v2053
    %v2072 = vld [vmem:[#allocation8] sm:$0xf]
    %v2073 = vld [vmem:[#allocation8 + $0x4] sm:$0xf]
    %v2074 = vld [vmem:[#allocation8 + $0x8] sm:$0xf]
    %v2075 = vld [vmem:[#allocation8 + $0xc] sm:$0xf]
    %v2076 = vld [vmem:[#allocation8 + $0x10] sm:$0xf]
    %v2077 = vld [vmem:[#allocation8 + $0x14] sm:$0xf]
    %v2078 = vld [vmem:[#allocation8 + $0x18] sm:$0xf]
    %v2079 = vld [vmem:[#allocation8 + $0x1c] sm:$0xf]
    %v2080 = vld [vmem:[#allocation8 + $0x20] sm:$0xf]
    %v2081 = vld [vmem:[#allocation8 + $0x24] sm:$0xf]
    %v2082 = vld [vmem:[#allocation8 + $0x28] sm:$0xf]
    %v2083 = vld [vmem:[#allocation8 + $0x2c] sm:$0xf]
    %v2084 = vld [vmem:[#allocation8 + $0x30] sm:$0xf]
    %v2085 = vld [vmem:[#allocation8 + $0x34] sm:$0xf]
    %v2086 = vld [vmem:[#allocation8 + $0x38] sm:$0xf]
    %v2087 = vld [vmem:[#allocation8 + $0x3c] sm:$0xf]
    %v2088 = vld [vmem:[#allocation8 + $0x40] sm:$0xf]
    %v2089 = vld [vmem:[#allocation8 + $0x44] sm:$0xf]
    %v2090 = vld [vmem:[#allocation8 + $0x48] sm:$0xf]
    %v2091 = vld [vmem:[#allocation8 + $0x4c] sm:$0xf]
    %v2092 = vld [vmem:[#allocation8 + $0x50] sm:$0xf]
    %v2093 = vld [vmem:[#allocation8 + $0x54] sm:$0xf]
    %v2094 = vld [vmem:[#allocation8 + $0x58] sm:$0xf]
    %v2095 = vld [vmem:[#allocation8 + $0x5c] sm:$0xf]
    %v2096 = vld [vmem:[#allocation8 + $0x60] sm:$0xf]
    %v2097 = vld [vmem:[#allocation8 + $0x64] sm:$0xf]
    %v2098 = vld [vmem:[#allocation8 + $0x68] sm:$0xf]
    %v2099 = vld [vmem:[#allocation8 + $0x6c] sm:$0xf]
    %v2100 = vld [vmem:[#allocation8 + $0x70] sm:$0xf]
    %v2101 = vld [vmem:[#allocation8 + $0x74] sm:$0xf]
    %v2102 = vld [vmem:[#allocation8 + $0x78] sm:$0xf]
    %v2103 = vld [vmem:[#allocation8 + $0x7c] sm:$0xf]
    %v2104 = vld [vmem:[%s8] sm:$0x1]
    %v2106 = vlaneseq
    %v2107 = vshrl.u32 %v2106, 7
    %v2108 = vsub.s32 0, %v2107
    %v2109 = vrot.slane %v2104, %v2108
    %v2143 = vunpack.c.l.b16 %v2072
    %v2144 = vunpack.c.l.b16 %v2073
    %v2145 = vunpack.c.l.b16 %v2074
    %v2146 = vunpack.c.l.b16 %v2075
    %v2147 = vunpack.c.l.b16 %v2076
    %v2148 = vunpack.c.l.b16 %v2077
    %v2149 = vunpack.c.l.b16 %v2078
    %v2150 = vunpack.c.l.b16 %v2079
    %v2151 = vunpack.c.l.b16 %v2080
    %v2152 = vunpack.c.l.b16 %v2081
    %v2153 = vunpack.c.l.b16 %v2082
    %v2154 = vunpack.c.l.b16 %v2083
    %v2155 = vunpack.c.l.b16 %v2084
    %v2156 = vunpack.c.l.b16 %v2085
    %v2157 = vunpack.c.l.b16 %v2086
    %v2158 = vunpack.c.l.b16 %v2087
    %v2159 = vunpack.c.l.b16 %v2088
    %v2160 = vunpack.c.l.b16 %v2089
    %v2161 = vunpack.c.l.b16 %v2090
    %v2162 = vunpack.c.l.b16 %v2091
    %v2163 = vunpack.c.l.b16 %v2092
    %v2164 = vunpack.c.l.b16 %v2093
    %v2165 = vunpack.c.l.b16 %v2094
    %v2166 = vunpack.c.l.b16 %v2095
    %v2167 = vunpack.c.l.b16 %v2096
    %v2168 = vunpack.c.l.b16 %v2097
    %v2169 = vunpack.c.l.b16 %v2098
    %v2170 = vunpack.c.l.b16 %v2099
    %v2171 = vunpack.c.l.b16 %v2100
    %v2172 = vunpack.c.l.b16 %v2101
    %v2173 = vunpack.c.l.b16 %v2102
    %v2174 = vunpack.c.l.b16 %v2103
    %v2175 = vpack.c.b16 %v2144, %v2143
    %v2176 = vpack.c.b16 %v2146, %v2145
    %v2177 = vpack.c.b16 %v2148, %v2147
    %v2178 = vpack.c.b16 %v2150, %v2149
    %v2179 = vpack.c.b16 %v2152, %v2151
    %v2180 = vpack.c.b16 %v2154, %v2153
    %v2181 = vpack.c.b16 %v2156, %v2155
    %v2182 = vpack.c.b16 %v2158, %v2157
    %v2183 = vpack.c.b16 %v2160, %v2159
    %v2184 = vpack.c.b16 %v2162, %v2161
    %v2185 = vpack.c.b16 %v2164, %v2163
    %v2186 = vpack.c.b16 %v2166, %v2165
    %v2187 = vpack.c.b16 %v2168, %v2167
    %v2188 = vpack.c.b16 %v2170, %v2169
    %v2189 = vpack.c.b16 %v2172, %v2171
    %v2190 = vpack.c.b16 %v2174, %v2173
    %2207 = vmatprep.subr.bf16.mxu0 0
    %2208 = vmatpush1.bf16.msra.mxu0 %v2182
    %2209 = vmatprep.subr.bf16.mxu0 0
    %2210 = vmatpush1.bf16.msra.mxu0 %v2181
    %2211 = vmatprep.subr.bf16.mxu0 0
    %2212 = vmatpush1.bf16.msra.mxu0 %v2180
    %2213 = vmatprep.subr.bf16.mxu0 0
    %2214 = vmatpush1.bf16.msra.mxu0 %v2179
    %2215 = vmatprep.subr.bf16.mxu0 0
    %2216 = vmatpush1.bf16.msra.mxu0 %v2178
    %2217 = vmatprep.subr.bf16.mxu0 0
    %2218 = vmatpush1.bf16.msra.mxu0 %v2177
    %2219 = vmatprep.subr.bf16.mxu0 0
    %2220 = vmatpush1.bf16.msra.mxu0 %v2176
    %2221 = vmatprep.subr.bf16.mxu0 0
    %2222 = vmatpush1.bf16.msra.mxu0 %v2175
    %2223 = vmatprep.subr.bf16.mxu0 0
    %2224 = vmatpush2.bf16.msra.mxu0 %v2190
    %2225 = vmatprep.subr.bf16.mxu0 0
    %2226 = vmatpush2.bf16.msra.mxu0 %v2189
    %2227 = vmatprep.subr.bf16.mxu0 0
    %2228 = vmatpush2.bf16.msra.mxu0 %v2188
    %2229 = vmatprep.subr.bf16.mxu0 0
    %2230 = vmatpush2.bf16.msra.mxu0 %v2187
    %2231 = vmatprep.subr.bf16.mxu0 0
    %2232 = vmatpush2.bf16.msra.mxu0 %v2186
    %2233 = vmatprep.subr.bf16.mxu0 0
    %2234 = vmatpush2.bf16.msra.mxu0 %v2185
    %2235 = vmatprep.subr.bf16.mxu0 0
    %2236 = vmatpush2.bf16.msra.mxu0 %v2184
    %2237 = vmatprep.subr.bf16.mxu0 0
    %2238 = vmatpush2.bf16.msra.mxu0 %v2183
    %2239 = vmatprep.mubr.bf16.mxu0 %v2057
    %2240 = vmatmul.mubr.bf16.gmra.mxu0 %v2056
    %v2241 = vpop.f32.mrf.mxu0
    %v2242 = vadd.f32 %v2109, %v2241
    %v2243 = vpop.f32.mrf.mxu0
    %v2244 = vpop.f32.mrf.mxu0
    %v2245 = vadd.f32 %v2109, %v2244
    %v2246 = vpop.f32.mrf.mxu0
    %2247 = vmatprep.mubr.bf16.mxu0 %v2059
    %2248 = vmatmul.mubr.bf16.gmra.mxu0 %v2058
    %v2249 = vpop.f32.mrf.mxu0
    %v2250 = vadd.f32 %v2109, %v2249
    %v2251 = vpop.f32.mrf.mxu0
    %v2252 = vpop.f32.mrf.mxu0
    %v2253 = vadd.f32 %v2109, %v2252
    %v2254 = vpop.f32.mrf.mxu0
    %2255 = vmatprep.mubr.bf16.mxu0 %v2061
    %2256 = vmatmul.mubr.bf16.gmra.mxu0 %v2060
    %v2257 = vpop.f32.mrf.mxu0
    %v2258 = vadd.f32 %v2109, %v2257
    %v2259 = vpop.f32.mrf.mxu0
    %v2260 = vpop.f32.mrf.mxu0
    %v2261 = vadd.f32 %v2109, %v2260
    %v2262 = vpop.f32.mrf.mxu0
    %2263 = vmatprep.mubr.bf16.mxu0 %v2063
    %2264 = vmatmul.mubr.bf16.gmra.mxu0 %v2062
    %v2265 = vpop.f32.mrf.mxu0
    %v2266 = vadd.f32 %v2109, %v2265
    %v2267 = vpop.f32.mrf.mxu0
    %v2268 = vpop.f32.mrf.mxu0
    %v2269 = vadd.f32 %v2109, %v2268
    %v2270 = vpop.f32.mrf.mxu0
    %2271 = vmatprep.mubr.bf16.mxu0 %v2065
    %2272 = vmatmul.mubr.bf16.gmra.mxu0 %v2064
    %v2273 = vpop.f32.mrf.mxu0
    %v2274 = vadd.f32 %v2109, %v2273
    %v2275 = vpop.f32.mrf.mxu0
    %v2276 = vpop.f32.mrf.mxu0
    %v2277 = vadd.f32 %v2109, %v2276
    %v2278 = vpop.f32.mrf.mxu0
    %2279 = vmatprep.mubr.bf16.mxu0 %v2067
    %2280 = vmatmul.mubr.bf16.gmra.mxu0 %v2066
    %v2281 = vpop.f32.mrf.mxu0
    %v2282 = vadd.f32 %v2109, %v2281
    %v2283 = vpop.f32.mrf.mxu0
    %v2284 = vpop.f32.mrf.mxu0
    %v2285 = vadd.f32 %v2109, %v2284
    %v2286 = vpop.f32.mrf.mxu0
    %2287 = vmatprep.mubr.bf16.mxu0 %v2069
    %2288 = vmatmul.mubr.bf16.gmra.mxu0 %v2068
    %v2289 = vpop.f32.mrf.mxu0
    %v2290 = vadd.f32 %v2109, %v2289
    %v2291 = vpop.f32.mrf.mxu0
    %v2292 = vpop.f32.mrf.mxu0
    %v2293 = vadd.f32 %v2109, %v2292
    %v2294 = vpop.f32.mrf.mxu0
    %2295 = vmatprep.mubr.bf16.mxu0 %v2071
    %2296 = vmatmul.mubr.bf16.gmra.mxu0 %v2070
    %v2297 = vpop.f32.mrf.mxu0
    %v2298 = vadd.f32 %v2109, %v2297
    %v2299 = vpop.f32.mrf.mxu0
    %v2300 = vpop.f32.mrf.mxu0
    %v2301 = vadd.f32 %v2109, %v2300
    %v2302 = vpop.f32.mrf.mxu0
    %2303 = vdwg.mxu0
    %2304 = vst [vmem:[#allocation10] sm:$0xff] %v2242
    %2305 = vst [vmem:[#allocation10 + $0x8] sm:$0xff] %v2245
    %2306 = vst [vmem:[#allocation10 + $0x10] sm:$0xff] %v2250
    %2307 = vst [vmem:[#allocation10 + $0x18] sm:$0xff] %v2253
    %2308 = vst [vmem:[#allocation10 + $0x20] sm:$0xff] %v2258
    %2309 = vst [vmem:[#allocation10 + $0x28] sm:$0xff] %v2261
    %2310 = vst [vmem:[#allocation10 + $0x30] sm:$0xff] %v2266
    %2311 = vst [vmem:[#allocation10 + $0x38] sm:$0xff] %v2269
    %2312 = vst [vmem:[#allocation10 + $0x40] sm:$0xff] %v2274
    %2313 = vst [vmem:[#allocation10 + $0x48] sm:$0xff] %v2277
    %2314 = vst [vmem:[#allocation10 + $0x50] sm:$0xff] %v2282
    %2315 = vst [vmem:[#allocation10 + $0x58] sm:$0xff] %v2285
    %2316 = vst [vmem:[#allocation10 + $0x60] sm:$0xff] %v2290
    %2317 = vst [vmem:[#allocation10 + $0x68] sm:$0xff] %v2293
    %2318 = vst [vmem:[#allocation10 + $0x70] sm:$0xff] %v2298
    %2319 = vst [vmem:[#allocation10 + $0x78] sm:$0xff] %v2301
    // Predicated region
    $region54: #{tpu_custom_call.1} parent=1 // pred_check
      _
    $region55: #{tpu_custom_call.1} parent=1 // pred_check_branch
      %2321 = sbr.rel (0) target = $region57
    $region56: #{tpu_custom_call.1} parent=1 // pred_region
      %s2323 = ssub.s32 2048, 2048
      %2324 = vsyncadd [#allocation4], %s2323
      %s2325 = sshll.u32 [#allocation10], 4
      %s2326 = int_to_ptr.vmem [resolvable:$true] %s2325
      %2331 = dma.vmem_to_hbm [thread:$0]  %s2326, 2048, %s9, [#allocation4], 128, 128, 8
    $region57: #{tpu_custom_call.1} parent=1 // pred_fallthru
      _
    // Predicated region
    $region58: #{tpu_custom_call.1} parent=1 // pred_check
      _
    $region59: #{tpu_custom_call.1} parent=1 // pred_check_branch
      %2333 = sbr.rel (0) target = $region61
    $region60: #{tpu_custom_call.1} parent=1 // pred_region
      %2334 = dma.done [#allocation4], 2048
    $region61: #{tpu_custom_call.1} parent=1 // pred_fallthru
      _
    %2335 = vsyncpa [#allocation3], 1
    %2336 = vsyncpa [#allocation6], 1
    %2337 = vsyncpa [#allocation9], 1
    %2338 = vsyncpa [#allocation4], 1

</llo_original>
